<compile_context>
chip_gen: v7x
topology: tpu7x:2x2x1
jax: 0.10.0
libtpu: 0.0.40
codegen_flags: <defaults>
</compile_context>

<pallas_src>
import math

import jax
import jax.numpy as jnp
from jax import lax
from jax.experimental import pallas as pl
from jax.experimental.pallas import tpu as pltpu


# ----------------------------------------------------------------------------
# Pallas kernel (whole forward fused into one invocation)
# ----------------------------------------------------------------------------
def make_fused_kernel(L, Bp):
    def fused_kernel(x_ref, wih_t_ref, whh_t_ref, b_ref,
                     w1t_ref, b1_ref, w2t_ref, b2_ref,
                     act_ref, logits_ref):
        # ---- hoisted input projection for ALL timesteps: (L*Bp, N) @ (N, N) ----
        # Bias broadcast happens exactly once here (not per timestep).
        act_ref[...] = (
            jnp.dot(x_ref[...], wih_t_ref[...],
                    preferred_element_type=jnp.float32)
            + b_ref[...]
        )

        whh_t = whh_t_ref[...]  # hoist weight load out of the time loop
        n = x_ref.shape[1]

        # ---- sequential recurrence over time, hidden carried as a value ----
        def step(t, h):
            row = t * Bp  # Bp is a multiple of 8 -> sublane-aligned slices
            pre = act_ref[pl.ds(row, Bp), :] + jnp.dot(
                h, whh_t, preferred_element_type=jnp.float32
            )
            h_new = jnp.maximum(pre, 0.0)  # nonlinearity = relu
            act_ref[pl.ds(row, Bp), :] = h_new
            return h_new

        h0 = jnp.zeros((Bp, n), jnp.float32)
        lax.fori_loop(0, L, step, h0, unroll=True)

        # ---- fused out_block on the raw input x (matches reference forward) ----
        hidden = jnp.maximum(
            jnp.dot(x_ref[...], w1t_ref[...],
                    preferred_element_type=jnp.float32)
            + b1_ref[...],
            0.0,
        )
        logits_ref[...] = (
            jnp.dot(hidden, w2t_ref[...], preferred_element_type=jnp.float32)
            + b2_ref[...]
        ).astype(logits_ref.dtype)

    return fused_kernel


# ----------------------------------------------------------------------------
# Wrapper
# ----------------------------------------------------------------------------
def topographical_rnn_forward(x, w_ih, w_hh, b_rnn, w1, b1, w2, b2):
    """Returns (logits, activations) == module.forward(x, return_activations=True)."""
    B, L, N = x.shape
    num_classes = w2.shape[0]
    hidden_dim = w1.shape[0]

    # Pad batch up to a multiple of 8 sublanes so in-kernel slices/stores are
    # full-sublane and unmasked; padded rows are dropped after the call.
    Bp = max(8, ((B + 7) // 8) * 8)

    # Time-major view so timestep t occupies contiguous, aligned rows.
    x_tm = jnp.transpose(x, (1, 0, 2)).astype(jnp.float32)  # (L, B, N)
    if Bp != B:
        x_tm = jnp.pad(x_tm, ((0, 0), (0, Bp - B), (0, 0)))
    x2d = x_tm.reshape(L * Bp, N)

    act2d, logits2d = pl.pallas_call(
        make_fused_kernel(L, Bp),
        out_shape=(
            jax.ShapeDtypeStruct((L * Bp, N), jnp.float32),
            jax.ShapeDtypeStruct((L * Bp, num_classes), jnp.float32),
        ),
        grid=(1,),
        in_specs=[
            pl.BlockSpec((L * Bp, N), lambda i: (0, 0)),           # x (time-major)
            pl.BlockSpec((N, N), lambda i: (0, 0)),                # W_ih^T
            pl.BlockSpec((N, N), lambda i: (0, 0)),                # W_hh^T
            pl.BlockSpec((1, N), lambda i: (0, 0)),                # b_rnn
            pl.BlockSpec((N, hidden_dim), lambda i: (0, 0)),       # W1^T
            pl.BlockSpec((1, hidden_dim), lambda i: (0, 0)),       # b1
            pl.BlockSpec((hidden_dim, num_classes), lambda i: (0, 0)),  # W2^T
            pl.BlockSpec((1, num_classes), lambda i: (0, 0)),      # b2
        ],
        out_specs=(
            pl.BlockSpec((L * Bp, N), lambda i: (0, 0)),           # activations
            pl.BlockSpec((L * Bp, num_classes), lambda i: (0, 0)), # logits
        ),
        compiler_params=pltpu.CompilerParams(
            dimension_semantics=("arbitrary",)
        ),
    )(
        x2d, w_ih.T, w_hh.T, b_rnn.reshape(1, N),
        w1.T, b1.reshape(1, hidden_dim), w2.T, b2.reshape(1, num_classes),
    )

    activations = act2d.reshape(L, Bp, N)[:, :B, :]                   # (L, B, N)
    logits = jnp.transpose(
        logits2d.reshape(L, Bp, num_classes)[:, :B, :], (1, 0, 2)
    )                                                                  # (B, L, C)
    return logits, activations


# ----------------------------------------------------------------------------
# Deterministic parameter construction (mirrors TopographicalRNN.__init__)
# ----------------------------------------------------------------------------
def random_connectivity(key, sheet_size, synapse_std, synapses_per_neuron,
                        self_recurrence=True):
    h, w = sheet_size
    n = h * w
    k1, k2, k3 = jax.random.split(key, 3)

    idx_1d = jnp.arange(n)
    idx_2d = jnp.stack([idx_1d // w, idx_1d % w], axis=1)  # (N, 2)

    syn = (
        jax.random.normal(k1, (n, 2, synapses_per_neuron), jnp.float32) * synapse_std
        + idx_2d[:, :, None].astype(jnp.float32)
    ).astype(jnp.int32)  # truncation toward zero, like .long()
    if self_recurrence:
        syn = jnp.concatenate([syn, idx_2d[:, :, None]], axis=2)  # (N, 2, S+1)

    rows = jnp.clip(syn[:, 0, :], 0, h - 1)
    cols = jnp.clip(syn[:, 1, :], 0, w - 1)
    syn_1d = rows * w + cols                                # (N, S+1)
    root = jnp.broadcast_to(idx_1d[:, None], syn_1d.shape)  # (N, S+1)

    rows_idx = syn_1d.reshape(-1)
    cols_idx = root.reshape(-1)
    nnz = rows_idx.shape[0]
    scale = math.sqrt(2.0 / synapses_per_neuron)
    vals_ih = jax.random.normal(k2, (nnz,), jnp.float32) * scale
    vals_hh = jax.random.normal(k3, (nnz,), jnp.float32) * scale

    # coalesce(): duplicate COO entries are summed.
    w_ih = jnp.zeros((n, n), jnp.float32).at[rows_idx, cols_idx].add(vals_ih)
    w_hh = jnp.zeros((n, n), jnp.float32).at[rows_idx, cols_idx].add(vals_hh)
    return w_ih, w_hh


def make_params(key, num_neurons, num_classes=10, hidden_dim=64):
    k_b, k_w1, k_b1, k_w2, k_b2 = jax.random.split(key, 5)
    bound_rnn = 1.0 / math.sqrt(num_neurons)
    b_rnn = jax.random.uniform(k_b, (num_neurons,), jnp.float32,
                               -bound_rnn, bound_rnn)
    bound1 = 1.0 / math.sqrt(num_neurons)
    w1 = jax.random.uniform(k_w1, (hidden_dim, num_neurons), jnp.float32,
                            -bound1, bound1)
    b1 = jax.random.uniform(k_b1, (hidden_dim,), jnp.float32, -bound1, bound1)
    bound2 = 1.0 / math.sqrt(hidden_dim)
    w2 = jax.random.uniform(k_w2, (num_classes, hidden_dim), jnp.float32,
                            -bound2, bound2)
    b2 = jax.random.uniform(k_b2, (num_classes,), jnp.float32, -bound2, bound2)
    return b_rnn, w1, b1, w2, b2


# ----------------------------------------------------------------------------
if __name__ == "__main__":
    # Small synthetic config consistent with the module:
    #   sheet 16x16 -> num_neurons = 256, 8 synapses/neuron, batch=2, seq=8.
    sheet_size = (16, 16)
    synapse_std = 2.0
    synapses_per_neuron = 8
    num_classes = 10
    B, L = 2, 8
    N = sheet_size[0] * sheet_size[1]

    root = jax.random.PRNGKey(0)
    k_conn, k_par, k_x = jax.random.split(root, 3)

    w_ih, w_hh = random_connectivity(
        k_conn, sheet_size, synapse_std, synapses_per_neuron, self_recurrence=True
    )
    b_rnn, w1, b1, w2, b2 = make_params(k_par, N, num_classes=num_classes)

    x = jax.random.normal(k_x, (B, L, N), jnp.float32)

    logits, activations = topographical_rnn_forward(
        x, w_ih, w_hh, b_rnn, w1, b1, w2, b2
    )
    jax.block_until_ready((logits, activations))

    assert logits.shape == (B, L, num_classes)
    assert activations.shape == (L, B, N)
    assert bool(jnp.all(jnp.isfinite(logits)))
    assert bool(jnp.all(jnp.isfinite(activations)))
    print("KERNEL_OK")
</pallas_src>

<mosaic_0001>
module attributes {stable_mosaic.version = 11 : i64} {
  func.func @fused_kernel(%arg0: i32, %arg1: memref<64x256xf32, #tpu.memory_space<vmem>>, %arg2: memref<256x256xf32, #tpu.memory_space<vmem>>, %arg3: memref<256x256xf32, #tpu.memory_space<vmem>>, %arg4: memref<1x256xf32, #tpu.memory_space<vmem>>, %arg5: memref<256x64xf32, #tpu.memory_space<vmem>>, %arg6: memref<1x64xf32, #tpu.memory_space<vmem>>, %arg7: memref<64x10xf32, #tpu.memory_space<vmem>>, %arg8: memref<1x10xf32, #tpu.memory_space<vmem>>, %arg9: memref<64x256xf32, #tpu.memory_space<vmem>>, %arg10: memref<64x10xf32, #tpu.memory_space<vmem>>) attributes {dimension_semantics = [#tpu.dimension_semantics<arbitrary>], iteration_bounds = array<i64: 1>, scalar_prefetch = 0 : i64, scratch_operands = 0 : i64, tpu.core_type = #tpu.core_type<tc>, window_params = [{pipeline_mode = #tpu.pipeline_mode<synchronous>, transform_indices = @transform_0, window_bounds = array<i64: 64, 256>}, {pipeline_mode = #tpu.pipeline_mode<synchronous>, transform_indices = @transform_1, window_bounds = array<i64: 256, 256>}, {pipeline_mode = #tpu.pipeline_mode<synchronous>, transform_indices = @transform_2, window_bounds = array<i64: 256, 256>}, {pipeline_mode = #tpu.pipeline_mode<synchronous>, transform_indices = @transform_3, window_bounds = array<i64: 1, 256>}, {pipeline_mode = #tpu.pipeline_mode<synchronous>, transform_indices = @transform_4, window_bounds = array<i64: 256, 64>}, {pipeline_mode = #tpu.pipeline_mode<synchronous>, transform_indices = @transform_5, window_bounds = array<i64: 1, 64>}, {pipeline_mode = #tpu.pipeline_mode<synchronous>, transform_indices = @transform_6, window_bounds = array<i64: 64, 10>}, {pipeline_mode = #tpu.pipeline_mode<synchronous>, transform_indices = @transform_7, window_bounds = array<i64: 1, 10>}, {pipeline_mode = #tpu.pipeline_mode<synchronous>, transform_indices = @transform_8, window_bounds = array<i64: 64, 256>}, {pipeline_mode = #tpu.pipeline_mode<synchronous>, transform_indices = @transform_9, window_bounds = array<i64: 64, 10>}]} {
    %c0 = arith.constant 0 : index
    %c0_0 = arith.constant 0 : index
    %0 = vector.load %arg1[%c0, %c0_0] : memref<64x256xf32, #tpu.memory_space<vmem>>, vector<64x256xf32>
    %c0_1 = arith.constant 0 : index
    %c0_2 = arith.constant 0 : index
    %1 = vector.load %arg2[%c0_1, %c0_2] : memref<256x256xf32, #tpu.memory_space<vmem>>, vector<256x256xf32>
    %cst = arith.constant dense<0.000000e+00> : vector<64x256xf32>
    %2 = tpu.matmul %0, %1, %cst {dimension_numbers = #tpu.dot_dimension_numbers<[1], [0], [0], [1], [0, 0, 1, 1], [], []>} : vector<64x256xf32>, vector<256x256xf32>, vector<64x256xf32> -> vector<64x256xf32>
    %c0_3 = arith.constant 0 : index
    %c0_4 = arith.constant 0 : index
    %3 = vector.load %arg4[%c0_3, %c0_4] : memref<1x256xf32, #tpu.memory_space<vmem>>, vector<1x256xf32>
    %4 = vector.broadcast %3 : vector<1x256xf32> to vector<64x256xf32>
    %5 = arith.addf %2, %4 : vector<64x256xf32>
    %c0_5 = arith.constant 0 : index
    %c0_6 = arith.constant 0 : index
    %6 = vector.load %arg9[%c0_5, %c0_6] : memref<64x256xf32, #tpu.memory_space<vmem>>, vector<64x256xf32>
    tpu.vector_store %arg9[%c0_5, %c0_6], %5 {strides = array<i32>} : memref<64x256xf32, #tpu.memory_space<vmem>>, vector<64x256xf32>,
    %c0_7 = arith.constant 0 : index
    %c0_8 = arith.constant 0 : index
    %7 = vector.load %arg3[%c0_7, %c0_8] : memref<256x256xf32, #tpu.memory_space<vmem>>, vector<256x256xf32>
    %cst_9 = arith.constant 0.000000e+00 : f32
    %8 = vector.broadcast %cst_9 : f32 to vector<8x256xf32>
    %c0_i32 = arith.constant 0 : i32
    %c8_i32 = arith.constant 8 : i32
    %9 = arith.muli %c0_i32, %c8_i32 : i32
    %10 = arith.index_cast %9 : i32 to index
    %c0_10 = arith.constant 0 : index
    %11 = vector.load %arg9[%10, %c0_10] : memref<64x256xf32, #tpu.memory_space<vmem>>, vector<8x256xf32>
    %cst_11 = arith.constant dense<0.000000e+00> : vector<8x256xf32>
    %12 = tpu.matmul %8, %7, %cst_11 {dimension_numbers = #tpu.dot_dimension_numbers<[1], [0], [0], [1], [0, 0, 1, 1], [], []>} : vector<8x256xf32>, vector<256x256xf32>, vector<8x256xf32> -> vector<8x256xf32>
    %13 = arith.addf %11, %12 : vector<8x256xf32>
    %cst_12 = arith.constant 0.000000e+00 : f32
    %14 = vector.broadcast %cst_12 : f32 to vector<8x256xf32>
    %15 = arith.maximumf %13, %14 : vector<8x256xf32>
    %16 = arith.index_cast %9 : i32 to index
    %c0_13 = arith.constant 0 : index
    %17 = vector.load %arg9[%16, %c0_13] : memref<64x256xf32, #tpu.memory_space<vmem>>, vector<8x256xf32>
    tpu.vector_store %arg9[%16, %c0_13], %15 {strides = array<i32>} : memref<64x256xf32, #tpu.memory_space<vmem>>, vector<8x256xf32>,
    %c1_i32 = arith.constant 1 : i32
    %c8_i32_14 = arith.constant 8 : i32
    %18 = arith.muli %c1_i32, %c8_i32_14 : i32
    %19 = arith.index_cast %18 : i32 to index
    %c0_15 = arith.constant 0 : index
    %20 = vector.load %arg9[%19, %c0_15] : memref<64x256xf32, #tpu.memory_space<vmem>>, vector<8x256xf32>
    %cst_16 = arith.constant dense<0.000000e+00> : vector<8x256xf32>
    %21 = tpu.matmul %15, %7, %cst_16 {dimension_numbers = #tpu.dot_dimension_numbers<[1], [0], [0], [1], [0, 0, 1, 1], [], []>} : vector<8x256xf32>, vector<256x256xf32>, vector<8x256xf32> -> vector<8x256xf32>
    %22 = arith.addf %20, %21 : vector<8x256xf32>
    %cst_17 = arith.constant 0.000000e+00 : f32
    %23 = vector.broadcast %cst_17 : f32 to vector<8x256xf32>
    %24 = arith.maximumf %22, %23 : vector<8x256xf32>
    %25 = arith.index_cast %18 : i32 to index
    %c0_18 = arith.constant 0 : index
    %26 = vector.load %arg9[%25, %c0_18] : memref<64x256xf32, #tpu.memory_space<vmem>>, vector<8x256xf32>
    tpu.vector_store %arg9[%25, %c0_18], %24 {strides = array<i32>} : memref<64x256xf32, #tpu.memory_space<vmem>>, vector<8x256xf32>,
    %c2_i32 = arith.constant 2 : i32
    %c8_i32_19 = arith.constant 8 : i32
    %27 = arith.muli %c2_i32, %c8_i32_19 : i32
    %28 = arith.index_cast %27 : i32 to index
    %c0_20 = arith.constant 0 : index
    %29 = vector.load %arg9[%28, %c0_20] : memref<64x256xf32, #tpu.memory_space<vmem>>, vector<8x256xf32>
    %cst_21 = arith.constant dense<0.000000e+00> : vector<8x256xf32>
    %30 = tpu.matmul %24, %7, %cst_21 {dimension_numbers = #tpu.dot_dimension_numbers<[1], [0], [0], [1], [0, 0, 1, 1], [], []>} : vector<8x256xf32>, vector<256x256xf32>, vector<8x256xf32> -> vector<8x256xf32>
    %31 = arith.addf %29, %30 : vector<8x256xf32>
    %cst_22 = arith.constant 0.000000e+00 : f32
    %32 = vector.broadcast %cst_22 : f32 to vector<8x256xf32>
    %33 = arith.maximumf %31, %32 : vector<8x256xf32>
    %34 = arith.index_cast %27 : i32 to index
    %c0_23 = arith.constant 0 : index
    %35 = vector.load %arg9[%34, %c0_23] : memref<64x256xf32, #tpu.memory_space<vmem>>, vector<8x256xf32>
    tpu.vector_store %arg9[%34, %c0_23], %33 {strides = array<i32>} : memref<64x256xf32, #tpu.memory_space<vmem>>, vector<8x256xf32>,
    %c3_i32 = arith.constant 3 : i32
    %c8_i32_24 = arith.constant 8 : i32
    %36 = arith.muli %c3_i32, %c8_i32_24 : i32
    %37 = arith.index_cast %36 : i32 to index
    %c0_25 = arith.constant 0 : index
    %38 = vector.load %arg9[%37, %c0_25] : memref<64x256xf32, #tpu.memory_space<vmem>>, vector<8x256xf32>
    %cst_26 = arith.constant dense<0.000000e+00> : vector<8x256xf32>
    %39 = tpu.matmul %33, %7, %cst_26 {dimension_numbers = #tpu.dot_dimension_numbers<[1], [0], [0], [1], [0, 0, 1, 1], [], []>} : vector<8x256xf32>, vector<256x256xf32>, vector<8x256xf32> -> vector<8x256xf32>
    %40 = arith.addf %38, %39 : vector<8x256xf32>
    %cst_27 = arith.constant 0.000000e+00 : f32
    %41 = vector.broadcast %cst_27 : f32 to vector<8x256xf32>
    %42 = arith.maximumf %40, %41 : vector<8x256xf32>
    %43 = arith.index_cast %36 : i32 to index
    %c0_28 = arith.constant 0 : index
    %44 = vector.load %arg9[%43, %c0_28] : memref<64x256xf32, #tpu.memory_space<vmem>>, vector<8x256xf32>
    tpu.vector_store %arg9[%43, %c0_28], %42 {strides = array<i32>} : memref<64x256xf32, #tpu.memory_space<vmem>>, vector<8x256xf32>,
    %c4_i32 = arith.constant 4 : i32
    %c8_i32_29 = arith.constant 8 : i32
    %45 = arith.muli %c4_i32, %c8_i32_29 : i32
    %46 = arith.index_cast %45 : i32 to index
    %c0_30 = arith.constant 0 : index
    %47 = vector.load %arg9[%46, %c0_30] : memref<64x256xf32, #tpu.memory_space<vmem>>, vector<8x256xf32>
    %cst_31 = arith.constant dense<0.000000e+00> : vector<8x256xf32>
    %48 = tpu.matmul %42, %7, %cst_31 {dimension_numbers = #tpu.dot_dimension_numbers<[1], [0], [0], [1], [0, 0, 1, 1], [], []>} : vector<8x256xf32>, vector<256x256xf32>, vector<8x256xf32> -> vector<8x256xf32>
    %49 = arith.addf %47, %48 : vector<8x256xf32>
    %cst_32 = arith.constant 0.000000e+00 : f32
    %50 = vector.broadcast %cst_32 : f32 to vector<8x256xf32>
    %51 = arith.maximumf %49, %50 : vector<8x256xf32>
    %52 = arith.index_cast %45 : i32 to index
    %c0_33 = arith.constant 0 : index
    %53 = vector.load %arg9[%52, %c0_33] : memref<64x256xf32, #tpu.memory_space<vmem>>, vector<8x256xf32>
    tpu.vector_store %arg9[%52, %c0_33], %51 {strides = array<i32>} : memref<64x256xf32, #tpu.memory_space<vmem>>, vector<8x256xf32>,
    %c5_i32 = arith.constant 5 : i32
    %c8_i32_34 = arith.constant 8 : i32
    %54 = arith.muli %c5_i32, %c8_i32_34 : i32
    %55 = arith.index_cast %54 : i32 to index
    %c0_35 = arith.constant 0 : index
    %56 = vector.load %arg9[%55, %c0_35] : memref<64x256xf32, #tpu.memory_space<vmem>>, vector<8x256xf32>
    %cst_36 = arith.constant dense<0.000000e+00> : vector<8x256xf32>
    %57 = tpu.matmul %51, %7, %cst_36 {dimension_numbers = #tpu.dot_dimension_numbers<[1], [0], [0], [1], [0, 0, 1, 1], [], []>} : vector<8x256xf32>, vector<256x256xf32>, vector<8x256xf32> -> vector<8x256xf32>
    %58 = arith.addf %56, %57 : vector<8x256xf32>
    %cst_37 = arith.constant 0.000000e+00 : f32
    %59 = vector.broadcast %cst_37 : f32 to vector<8x256xf32>
    %60 = arith.maximumf %58, %59 : vector<8x256xf32>
    %61 = arith.index_cast %54 : i32 to index
    %c0_38 = arith.constant 0 : index
    %62 = vector.load %arg9[%61, %c0_38] : memref<64x256xf32, #tpu.memory_space<vmem>>, vector<8x256xf32>
    tpu.vector_store %arg9[%61, %c0_38], %60 {strides = array<i32>} : memref<64x256xf32, #tpu.memory_space<vmem>>, vector<8x256xf32>,
    %c6_i32 = arith.constant 6 : i32
    %c8_i32_39 = arith.constant 8 : i32
    %63 = arith.muli %c6_i32, %c8_i32_39 : i32
    %64 = arith.index_cast %63 : i32 to index
    %c0_40 = arith.constant 0 : index
    %65 = vector.load %arg9[%64, %c0_40] : memref<64x256xf32, #tpu.memory_space<vmem>>, vector<8x256xf32>
    %cst_41 = arith.constant dense<0.000000e+00> : vector<8x256xf32>
    %66 = tpu.matmul %60, %7, %cst_41 {dimension_numbers = #tpu.dot_dimension_numbers<[1], [0], [0], [1], [0, 0, 1, 1], [], []>} : vector<8x256xf32>, vector<256x256xf32>, vector<8x256xf32> -> vector<8x256xf32>
    %67 = arith.addf %65, %66 : vector<8x256xf32>
    %cst_42 = arith.constant 0.000000e+00 : f32
    %68 = vector.broadcast %cst_42 : f32 to vector<8x256xf32>
    %69 = arith.maximumf %67, %68 : vector<8x256xf32>
    %70 = arith.index_cast %63 : i32 to index
    %c0_43 = arith.constant 0 : index
    %71 = vector.load %arg9[%70, %c0_43] : memref<64x256xf32, #tpu.memory_space<vmem>>, vector<8x256xf32>
    tpu.vector_store %arg9[%70, %c0_43], %69 {strides = array<i32>} : memref<64x256xf32, #tpu.memory_space<vmem>>, vector<8x256xf32>,
    %c7_i32 = arith.constant 7 : i32
    %c8_i32_44 = arith.constant 8 : i32
    %72 = arith.muli %c7_i32, %c8_i32_44 : i32
    %73 = arith.index_cast %72 : i32 to index
    %c0_45 = arith.constant 0 : index
    %74 = vector.load %arg9[%73, %c0_45] : memref<64x256xf32, #tpu.memory_space<vmem>>, vector<8x256xf32>
    %cst_46 = arith.constant dense<0.000000e+00> : vector<8x256xf32>
    %75 = tpu.matmul %69, %7, %cst_46 {dimension_numbers = #tpu.dot_dimension_numbers<[1], [0], [0], [1], [0, 0, 1, 1], [], []>} : vector<8x256xf32>, vector<256x256xf32>, vector<8x256xf32> -> vector<8x256xf32>
    %76 = arith.addf %74, %75 : vector<8x256xf32>
    %cst_47 = arith.constant 0.000000e+00 : f32
    %77 = vector.broadcast %cst_47 : f32 to vector<8x256xf32>
    %78 = arith.maximumf %76, %77 : vector<8x256xf32>
    %79 = arith.index_cast %72 : i32 to index
    %c0_48 = arith.constant 0 : index
    %80 = vector.load %arg9[%79, %c0_48] : memref<64x256xf32, #tpu.memory_space<vmem>>, vector<8x256xf32>
    tpu.vector_store %arg9[%79, %c0_48], %78 {strides = array<i32>} : memref<64x256xf32, #tpu.memory_space<vmem>>, vector<8x256xf32>,
    %c8_i32_49 = arith.constant 8 : i32
    %c0_50 = arith.constant 0 : index
    %c0_51 = arith.constant 0 : index
    %81 = vector.load %arg1[%c0_50, %c0_51] : memref<64x256xf32, #tpu.memory_space<vmem>>, vector<64x256xf32>
    %c0_52 = arith.constant 0 : index
    %c0_53 = arith.constant 0 : index
    %82 = vector.load %arg5[%c0_52, %c0_53] : memref<256x64xf32, #tpu.memory_space<vmem>>, vector<256x64xf32>
    %cst_54 = arith.constant dense<0.000000e+00> : vector<64x64xf32>
    %83 = tpu.matmul %81, %82, %cst_54 {dimension_numbers = #tpu.dot_dimension_numbers<[1], [0], [0], [1], [0, 0, 1, 1], [], []>} : vector<64x256xf32>, vector<256x64xf32>, vector<64x64xf32> -> vector<64x64xf32>
    %c0_55 = arith.constant 0 : index
    %c0_56 = arith.constant 0 : index
    %84 = vector.load %arg6[%c0_55, %c0_56] : memref<1x64xf32, #tpu.memory_space<vmem>>, vector<1x64xf32>
    %85 = vector.broadcast %84 : vector<1x64xf32> to vector<64x64xf32>
    %86 = arith.addf %83, %85 : vector<64x64xf32>
    %cst_57 = arith.constant 0.000000e+00 : f32
    %87 = vector.broadcast %cst_57 : f32 to vector<64x64xf32>
    %88 = arith.maximumf %86, %87 : vector<64x64xf32>
    %c0_58 = arith.constant 0 : index
    %c0_59 = arith.constant 0 : index
    %89 = vector.load %arg7[%c0_58, %c0_59] : memref<64x10xf32, #tpu.memory_space<vmem>>, vector<64x10xf32>
    %cst_60 = arith.constant dense<0.000000e+00> : vector<64x10xf32>
    %90 = tpu.matmul %88, %89, %cst_60 {dimension_numbers = #tpu.dot_dimension_numbers<[1], [0], [0], [1], [0, 0, 1, 1], [], []>} : vector<64x64xf32>, vector<64x10xf32>, vector<64x10xf32> -> vector<64x10xf32>
    %c0_61 = arith.constant 0 : index
    %c0_62 = arith.constant 0 : index
    %91 = vector.load %arg8[%c0_61, %c0_62] : memref<1x10xf32, #tpu.memory_space<vmem>>, vector<1x10xf32>
    %92 = vector.broadcast %91 : vector<1x10xf32> to vector<64x10xf32>
    %93 = arith.addf %90, %92 : vector<64x10xf32>
    %c0_63 = arith.constant 0 : index
    %c0_64 = arith.constant 0 : index
    %94 = vector.load %arg10[%c0_63, %c0_64] : memref<64x10xf32, #tpu.memory_space<vmem>>, vector<64x10xf32>
    tpu.vector_store %arg10[%c0_63, %c0_64], %93 {strides = array<i32>} : memref<64x10xf32, #tpu.memory_space<vmem>>, vector<64x10xf32>,
    return
  }
  func.func @transform_0(%arg0: i32) -> (i32, i32) {
    %c0_i32 = arith.constant 0 : i32
    %c0_i32_0 = arith.constant 0 : i32
    %c0_i32_1 = arith.constant 0 : i32
    return %c0_i32, %c0_i32_0 : i32, i32
  }
  func.func @transform_1(%arg0: i32) -> (i32, i32) {
    %c0_i32 = arith.constant 0 : i32
    %c0_i32_0 = arith.constant 0 : i32
    %c0_i32_1 = arith.constant 0 : i32
    return %c0_i32, %c0_i32_0 : i32, i32
  }
  func.func @transform_2(%arg0: i32) -> (i32, i32) {
    %c0_i32 = arith.constant 0 : i32
    %c0_i32_0 = arith.constant 0 : i32
    %c0_i32_1 = arith.constant 0 : i32
    return %c0_i32, %c0_i32_0 : i32, i32
  }
  func.func @transform_3(%arg0: i32) -> (i32, i32) {
    %c0_i32 = arith.constant 0 : i32
    %c0_i32_0 = arith.constant 0 : i32
    %c0_i32_1 = arith.constant 0 : i32
    return %c0_i32, %c0_i32_0 : i32, i32
  }
  func.func @transform_4(%arg0: i32) -> (i32, i32) {
    %c0_i32 = arith.constant 0 : i32
    %c0_i32_0 = arith.constant 0 : i32
    %c0_i32_1 = arith.constant 0 : i32
    return %c0_i32, %c0_i32_0 : i32, i32
  }
  func.func @transform_5(%arg0: i32) -> (i32, i32) {
    %c0_i32 = arith.constant 0 : i32
    %c0_i32_0 = arith.constant 0 : i32
    %c0_i32_1 = arith.constant 0 : i32
    return %c0_i32, %c0_i32_0 : i32, i32
  }
  func.func @transform_6(%arg0: i32) -> (i32, i32) {
    %c0_i32 = arith.constant 0 : i32
    %c0_i32_0 = arith.constant 0 : i32
    %c0_i32_1 = arith.constant 0 : i32
    return %c0_i32, %c0_i32_0 : i32, i32
  }
  func.func @transform_7(%arg0: i32) -> (i32, i32) {
    %c0_i32 = arith.constant 0 : i32
    %c0_i32_0 = arith.constant 0 : i32
    %c0_i32_1 = arith.constant 0 : i32
    return %c0_i32, %c0_i32_0 : i32, i32
  }
  func.func @transform_8(%arg0: i32) -> (i32, i32) {
    %c0_i32 = arith.constant 0 : i32
    %c0_i32_0 = arith.constant 0 : i32
    %c0_i32_1 = arith.constant 0 : i32
    return %c0_i32, %c0_i32_0 : i32, i32
  }
  func.func @transform_9(%arg0: i32) -> (i32, i32) {
    %c0_i32 = arith.constant 0 : i32
    %c0_i32_0 = arith.constant 0 : i32
    %c0_i32_1 = arith.constant 0 : i32
    return %c0_i32, %c0_i32_0 : i32, i32
  }
}

</mosaic_0001>

<llo_original>
// kernel: tpu_custom_call.1
$region0: #{tpu_custom_call.1}
  #allocation0 [shape = 'u32[]', space=smem, size = 0x4, offset = 0x4, fixed_abs, tag = 'smem constant byte address 0x4 - core index']
  #allocation1 [shape = 'u32[144,128]{1,0:T(1,128)}', space=vmem, size = 0x12000, scoped, tag = 'internal scratch']
  %s0 = inlined_call_operand.vmem [shape: f32[64,256], index: 0, kind: input, shape index: {}]
  %s1 = inlined_call_operand.hbm [shape: f32[256,256], index: 1, kind: input, shape index: {}]
  %s2 = inlined_call_operand.hbm [shape: f32[256,256], index: 2, kind: input, shape index: {}]
  %s3 = inlined_call_operand.vmem [shape: f32[1,256], index: 3, kind: input, shape index: {}]
  %s4 = inlined_call_operand.vmem [shape: f32[256,64], index: 4, kind: input, shape index: {}]
  %s5 = inlined_call_operand.vmem [shape: f32[1,64], index: 5, kind: input, shape index: {}]
  %s6 = inlined_call_operand.vmem [shape: f32[64,10], index: 6, kind: input, shape index: {}]
  %s7 = inlined_call_operand.vmem [shape: f32[1,10], index: 7, kind: input, shape index: {}]
  %s8 = inlined_call_operand.hbm [shape: f32[64,256], index: 8, kind: output, shape index: {0}]
  %s9 = inlined_call_operand.vmem [shape: f32[64,10], index: 9, kind: output, shape index: {1}]
  %10 = xla_tuple %s8, %s9
  %s11 = sld [smem:[#allocation0]]
  $region58: #{tpu_custom_call.1} parent=0
    _
  %s13 = ssub.s32 1, %s11
  %s14 = scalar_select 0, %s13, %s11
  $region1: #{tpu_custom_call.1} parent=0
    #allocation2 [shape = 'u8[262144]{0}', space=vmem, size = 0x40000, scoped, tag = 'input window, operand 1, single buffered']
    #allocation3 [shape = 's32[1]{0}', space=sflag, size = 0x4, scoped, tag = 'scoped memory for tpu_custom_call.1']
    #allocation4 [shape = 's32[1]{0}', space=sflag, size = 0x4, scoped, tag = 'scoped memory for tpu_custom_call.1']
    #allocation5 [shape = 'u8[262144]{0}', space=vmem, size = 0x40000, scoped, tag = 'input window, operand 2, single buffered']
    #allocation6 [shape = 's32[1]{0}', space=sflag, size = 0x4, scoped, tag = 'scoped memory for tpu_custom_call.1']
    #allocation7 [shape = 'u8[65536]{0}', space=vmem, size = 0x10000, scoped, tag = 'output window, operand 0, single buffered']
    %15 = vsyncpa [#allocation3], 0
    %16 = vsyncpa [#allocation6], 0
    %17 = vsyncpa [#allocation4], 0
    // Predicated region
    $region2: #{tpu_custom_call.1} parent=1 // pred_check
      _
    $region3: #{tpu_custom_call.1} parent=1 // pred_check_branch
      %19 = sbr.rel (0) target = $region5
    $region4: #{tpu_custom_call.1} parent=1 // pred_region
      _
    $region5: #{tpu_custom_call.1} parent=1 // pred_fallthru
      _
    // Predicated region
    $region6: #{tpu_custom_call.1} parent=1 // pred_check
      _
    $region7: #{tpu_custom_call.1} parent=1 // pred_check_branch
      %21 = sbr.rel (0) target = $region9
    $region8: #{tpu_custom_call.1} parent=1 // pred_region
      %s23 = ssub.s32 8192, 8192
      %24 = vsyncadd [#allocation3], %s23
      %s25 = sshll.u32 [#allocation2], 4
      %s26 = int_to_ptr.vmem [resolvable:$true] %s25
      %31 = dma.hbm_to_vmem [thread:$0]  %s1, 8192, %s26, [#allocation3], 256, 256, 16
    $region9: #{tpu_custom_call.1} parent=1 // pred_fallthru
      _
    // Predicated region
    $region10: #{tpu_custom_call.1} parent=1 // pred_check
      _
    $region11: #{tpu_custom_call.1} parent=1 // pred_check_branch
      %33 = sbr.rel (0) target = $region13
    $region12: #{tpu_custom_call.1} parent=1 // pred_region
      %s35 = ssub.s32 8192, 8192
      %36 = vsyncadd [#allocation6], %s35
      %s37 = sshll.u32 [#allocation5], 4
      %s38 = int_to_ptr.vmem [resolvable:$true] %s37
      %43 = dma.hbm_to_vmem [thread:$0]  %s2, 8192, %s38, [#allocation6], 256, 256, 16
    $region13: #{tpu_custom_call.1} parent=1 // pred_fallthru
      _
    // Predicated region
    $region14: #{tpu_custom_call.1} parent=1 // pred_check
      _
    $region15: #{tpu_custom_call.1} parent=1 // pred_check_branch
      %45 = sbr.rel (0) target = $region17
    $region16: #{tpu_custom_call.1} parent=1 // pred_region
      _
    $region17: #{tpu_custom_call.1} parent=1 // pred_fallthru
      _
    // Predicated region
    $region18: #{tpu_custom_call.1} parent=1 // pred_check
      _
    $region19: #{tpu_custom_call.1} parent=1 // pred_check_branch
      %47 = sbr.rel (0) target = $region21
    $region20: #{tpu_custom_call.1} parent=1 // pred_region
      _
    $region21: #{tpu_custom_call.1} parent=1 // pred_fallthru
      _
    // Predicated region
    $region22: #{tpu_custom_call.1} parent=1 // pred_check
      _
    $region23: #{tpu_custom_call.1} parent=1 // pred_check_branch
      %49 = sbr.rel (0) target = $region25
    $region24: #{tpu_custom_call.1} parent=1 // pred_region
      _
    $region25: #{tpu_custom_call.1} parent=1 // pred_fallthru
      _
    // Predicated region
    $region26: #{tpu_custom_call.1} parent=1 // pred_check
      _
    $region27: #{tpu_custom_call.1} parent=1 // pred_check_branch
      %51 = sbr.rel (0) target = $region29
    $region28: #{tpu_custom_call.1} parent=1 // pred_region
      _
    $region29: #{tpu_custom_call.1} parent=1 // pred_fallthru
      _
    // Predicated region
    $region30: #{tpu_custom_call.1} parent=1 // pred_check
      _
    $region31: #{tpu_custom_call.1} parent=1 // pred_check_branch
      %53 = sbr.rel (0) target = $region33
    $region32: #{tpu_custom_call.1} parent=1 // pred_region
      _
    $region33: #{tpu_custom_call.1} parent=1 // pred_fallthru
      _
    // Predicated region
    $region34: #{tpu_custom_call.1} parent=1 // pred_check
      _
    $region35: #{tpu_custom_call.1} parent=1 // pred_check_branch
      %55 = sbr.rel (0) target = $region37
    $region36: #{tpu_custom_call.1} parent=1 // pred_region
      %56 = dma.done [#allocation3], 8192
    $region37: #{tpu_custom_call.1} parent=1 // pred_fallthru
      _
    // Predicated region
    $region38: #{tpu_custom_call.1} parent=1 // pred_check
      _
    $region39: #{tpu_custom_call.1} parent=1 // pred_check_branch
      %58 = sbr.rel (0) target = $region41
    $region40: #{tpu_custom_call.1} parent=1 // pred_region
      %59 = dma.done [#allocation6], 8192
    $region41: #{tpu_custom_call.1} parent=1 // pred_fallthru
      _
    %v60 = vld [vmem:[%s0] sm:$0xff]
    %v61 = vld [vmem:[%s0 + $0x8] sm:$0xff]
    %v62 = vld [vmem:[%s0 + $0x10] sm:$0xff]
    %v63 = vld [vmem:[%s0 + $0x18] sm:$0xff]
    %v64 = vld [vmem:[%s0 + $0x20] sm:$0xff]
    %v65 = vld [vmem:[%s0 + $0x28] sm:$0xff]
    %v66 = vld [vmem:[%s0 + $0x30] sm:$0xff]
    %v67 = vld [vmem:[%s0 + $0x38] sm:$0xff]
    %v68 = vld [vmem:[%s0 + $0x40] sm:$0xff]
    %v69 = vld [vmem:[%s0 + $0x48] sm:$0xff]
    %v70 = vld [vmem:[%s0 + $0x50] sm:$0xff]
    %v71 = vld [vmem:[%s0 + $0x58] sm:$0xff]
    %v72 = vld [vmem:[%s0 + $0x60] sm:$0xff]
    %v73 = vld [vmem:[%s0 + $0x68] sm:$0xff]
    %v74 = vld [vmem:[%s0 + $0x70] sm:$0xff]
    %v75 = vld [vmem:[%s0 + $0x78] sm:$0xff]
    %v76 = vld [vmem:[#allocation2] sm:$0xff]
    %v77 = vld [vmem:[#allocation2 + $0x8] sm:$0xff]
    %v78 = vld [vmem:[#allocation2 + $0x10] sm:$0xff]
    %v79 = vld [vmem:[#allocation2 + $0x18] sm:$0xff]
    %v80 = vld [vmem:[#allocation2 + $0x20] sm:$0xff]
    %v81 = vld [vmem:[#allocation2 + $0x28] sm:$0xff]
    %v82 = vld [vmem:[#allocation2 + $0x30] sm:$0xff]
    %v83 = vld [vmem:[#allocation2 + $0x38] sm:$0xff]
    %v84 = vld [vmem:[#allocation2 + $0x40] sm:$0xff]
    %v85 = vld [vmem:[#allocation2 + $0x48] sm:$0xff]
    %v86 = vld [vmem:[#allocation2 + $0x50] sm:$0xff]
    %v87 = vld [vmem:[#allocation2 + $0x58] sm:$0xff]
    %v88 = vld [vmem:[#allocation2 + $0x60] sm:$0xff]
    %v89 = vld [vmem:[#allocation2 + $0x68] sm:$0xff]
    %v90 = vld [vmem:[#allocation2 + $0x70] sm:$0xff]
    %v91 = vld [vmem:[#allocation2 + $0x78] sm:$0xff]
    %v92 = vld [vmem:[#allocation2 + $0x80] sm:$0xff]
    %v93 = vld [vmem:[#allocation2 + $0x88] sm:$0xff]
    %v94 = vld [vmem:[#allocation2 + $0x90] sm:$0xff]
    %v95 = vld [vmem:[#allocation2 + $0x98] sm:$0xff]
    %v96 = vld [vmem:[#allocation2 + $0xa0] sm:$0xff]
    %v97 = vld [vmem:[#allocation2 + $0xa8] sm:$0xff]
    %v98 = vld [vmem:[#allocation2 + $0xb0] sm:$0xff]
    %v99 = vld [vmem:[#allocation2 + $0xb8] sm:$0xff]
    %v100 = vld [vmem:[#allocation2 + $0xc0] sm:$0xff]
    %v101 = vld [vmem:[#allocation2 + $0xc8] sm:$0xff]
    %v102 = vld [vmem:[#allocation2 + $0xd0] sm:$0xff]
    %v103 = vld [vmem:[#allocation2 + $0xd8] sm:$0xff]
    %v104 = vld [vmem:[#allocation2 + $0xe0] sm:$0xff]
    %v105 = vld [vmem:[#allocation2 + $0xe8] sm:$0xff]
    %v106 = vld [vmem:[#allocation2 + $0xf0] sm:$0xff]
    %v107 = vld [vmem:[#allocation2 + $0xf8] sm:$0xff]
    %v108 = vld [vmem:[#allocation2 + $0x100] sm:$0xff]
    %v109 = vld [vmem:[#allocation2 + $0x108] sm:$0xff]
    %v110 = vld [vmem:[#allocation2 + $0x110] sm:$0xff]
    %v111 = vld [vmem:[#allocation2 + $0x118] sm:$0xff]
    %v112 = vld [vmem:[#allocation2 + $0x120] sm:$0xff]
    %v113 = vld [vmem:[#allocation2 + $0x128] sm:$0xff]
    %v114 = vld [vmem:[#allocation2 + $0x130] sm:$0xff]
    %v115 = vld [vmem:[#allocation2 + $0x138] sm:$0xff]
    %v116 = vld [vmem:[#allocation2 + $0x140] sm:$0xff]
    %v117 = vld [vmem:[#allocation2 + $0x148] sm:$0xff]
    %v118 = vld [vmem:[#allocation2 + $0x150] sm:$0xff]
    %v119 = vld [vmem:[#allocation2 + $0x158] sm:$0xff]
    %v120 = vld [vmem:[#allocation2 + $0x160] sm:$0xff]
    %v121 = vld [vmem:[#allocation2 + $0x168] sm:$0xff]
    %v122 = vld [vmem:[#allocation2 + $0x170] sm:$0xff]
    %v123 = vld [vmem:[#allocation2 + $0x178] sm:$0xff]
    %v124 = vld [vmem:[#allocation2 + $0x180] sm:$0xff]
    %v125 = vld [vmem:[#allocation2 + $0x188] sm:$0xff]
    %v126 = vld [vmem:[#allocation2 + $0x190] sm:$0xff]
    %v127 = vld [vmem:[#allocation2 + $0x198] sm:$0xff]
    %v128 = vld [vmem:[#allocation2 + $0x1a0] sm:$0xff]
    %v129 = vld [vmem:[#allocation2 + $0x1a8] sm:$0xff]
    %v130 = vld [vmem:[#allocation2 + $0x1b0] sm:$0xff]
    %v131 = vld [vmem:[#allocation2 + $0x1b8] sm:$0xff]
    %v132 = vld [vmem:[#allocation2 + $0x1c0] sm:$0xff]
    %v133 = vld [vmem:[#allocation2 + $0x1c8] sm:$0xff]
    %v134 = vld [vmem:[#allocation2 + $0x1d0] sm:$0xff]
    %v135 = vld [vmem:[#allocation2 + $0x1d8] sm:$0xff]
    %v136 = vld [vmem:[#allocation2 + $0x1e0] sm:$0xff]
    %v137 = vld [vmem:[#allocation2 + $0x1e8] sm:$0xff]
    %v138 = vld [vmem:[#allocation2 + $0x1f0] sm:$0xff]
    %v139 = vld [vmem:[#allocation2 + $0x1f8] sm:$0xff]
    %v140 = vld [vmem:[%s3] sm:$0x3]
    %v142 = vlaneseq
    %v143 = vshrl.u32 %v142, 7
    %v144 = vsub.s32 0, %v143
    %v145 = vrot.slane %v140, %v144
    %v146 = vlaneseq
    %v147 = vshrl.u32 %v146, 7
    %v148 = vsub.s32 1, %v147
    %v149 = vrot.slane %v140, %v148
    %152 = vmatprep.subr.mxu0 %v77
    %153 = vmatpush1.msra.mxu0 %v76
    %154 = vmatprep.subr.mxu0 %v79
    %155 = vmatpush1.msra.mxu0 %v78
    %156 = vmatprep.subr.mxu0 %v81
    %157 = vmatpush1.msra.mxu0 %v80
    %158 = vmatprep.subr.mxu0 %v83
    %159 = vmatpush1.msra.mxu0 %v82
    %160 = vmatprep.subr.mxu0 %v85
    %161 = vmatpush1.msra.mxu0 %v84
    %162 = vmatprep.subr.mxu0 %v87
    %163 = vmatpush1.msra.mxu0 %v86
    %164 = vmatprep.subr.mxu0 %v89
    %165 = vmatpush1.msra.mxu0 %v88
    %166 = vmatprep.subr.mxu0 %v91
    %167 = vmatpush1.msra.mxu0 %v90
    %168 = vmatprep.subr.mxu0 %v93
    %169 = vmatpush1.msra.mxu0 %v92
    %170 = vmatprep.subr.mxu0 %v95
    %171 = vmatpush1.msra.mxu0 %v94
    %172 = vmatprep.subr.mxu0 %v97
    %173 = vmatpush1.msra.mxu0 %v96
    %174 = vmatprep.subr.mxu0 %v99
    %175 = vmatpush1.msra.mxu0 %v98
    %176 = vmatprep.subr.mxu0 %v101
    %177 = vmatpush1.msra.mxu0 %v100
    %178 = vmatprep.subr.mxu0 %v103
    %179 = vmatpush1.msra.mxu0 %v102
    %180 = vmatprep.subr.mxu0 %v105
    %181 = vmatpush1.msra.mxu0 %v104
    %182 = vmatprep.subr.mxu0 %v107
    %183 = vmatpush1.msra.mxu0 %v106
    %184 = vmatprep.subr.mxu0 %v109
    %185 = vmatpush1.msra.mxu0 %v108
    %186 = vmatprep.subr.mxu0 %v111
    %187 = vmatpush1.msra.mxu0 %v110
    %188 = vmatprep.subr.mxu0 %v113
    %189 = vmatpush1.msra.mxu0 %v112
    %190 = vmatprep.subr.mxu0 %v115
    %191 = vmatpush1.msra.mxu0 %v114
    %192 = vmatprep.subr.mxu0 %v117
    %193 = vmatpush1.msra.mxu0 %v116
    %194 = vmatprep.subr.mxu0 %v119
    %195 = vmatpush1.msra.mxu0 %v118
    %196 = vmatprep.subr.mxu0 %v121
    %197 = vmatpush1.msra.mxu0 %v120
    %198 = vmatprep.subr.mxu0 %v123
    %199 = vmatpush1.msra.mxu0 %v122
    %200 = vmatprep.subr.mxu0 %v125
    %201 = vmatpush1.msra.mxu0 %v124
    %202 = vmatprep.subr.mxu0 %v127
    %203 = vmatpush1.msra.mxu0 %v126
    %204 = vmatprep.subr.mxu0 %v129
    %205 = vmatpush1.msra.mxu0 %v128
    %206 = vmatprep.subr.mxu0 %v131
    %207 = vmatpush1.msra.mxu0 %v130
    %208 = vmatprep.subr.mxu0 %v133
    %209 = vmatpush1.msra.mxu0 %v132
    %210 = vmatprep.subr.mxu0 %v135
    %211 = vmatpush1.msra.mxu0 %v134
    %212 = vmatprep.subr.mxu0 %v137
    %213 = vmatpush1.msra.mxu0 %v136
    %214 = vmatprep.subr.mxu0 %v139
    %215 = vmatpush1.msra.mxu0 %v138
    %216 = vmatprep.mubr.f32.mxu0 %v61
    %217 = vmatmul.mubr.f32.gmra.mrb[0].mxu0 %v60
    %v218 = vpop.f32.mrb[0].mxu0
    %v219 = vadd.f32 %v145, %v218
    %v220 = vpop.f32.mrb[0].mxu0
    %v221 = vadd.f32 %v149, %v220
    %222 = vmatprep.mubr.f32.mxu0 %v63
    %223 = vmatmul.mubr.f32.gmra.mrb[0].mxu0 %v62
    %v224 = vpop.f32.mrb[0].mxu0
    %v225 = vadd.f32 %v145, %v224
    %v226 = vpop.f32.mrb[0].mxu0
    %v227 = vadd.f32 %v149, %v226
    %228 = vmatprep.mubr.f32.mxu0 %v65
    %229 = vmatmul.mubr.f32.gmra.mrb[0].mxu0 %v64
    %v230 = vpop.f32.mrb[0].mxu0
    %v231 = vadd.f32 %v145, %v230
    %v232 = vpop.f32.mrb[0].mxu0
    %v233 = vadd.f32 %v149, %v232
    %234 = vmatprep.mubr.f32.mxu0 %v67
    %235 = vmatmul.mubr.f32.gmra.mrb[0].mxu0 %v66
    %v236 = vpop.f32.mrb[0].mxu0
    %v237 = vadd.f32 %v145, %v236
    %v238 = vpop.f32.mrb[0].mxu0
    %v239 = vadd.f32 %v149, %v238
    %240 = vmatprep.mubr.f32.mxu0 %v69
    %241 = vmatmul.mubr.f32.gmra.mrb[0].mxu0 %v68
    %v242 = vpop.f32.mrb[0].mxu0
    %v243 = vadd.f32 %v145, %v242
    %v244 = vpop.f32.mrb[0].mxu0
    %v245 = vadd.f32 %v149, %v244
    %246 = vmatprep.mubr.f32.mxu0 %v71
    %247 = vmatmul.mubr.f32.gmra.mrb[0].mxu0 %v70
    %v248 = vpop.f32.mrb[0].mxu0
    %v249 = vadd.f32 %v145, %v248
    %v250 = vpop.f32.mrb[0].mxu0
    %v251 = vadd.f32 %v149, %v250
    %252 = vmatprep.mubr.f32.mxu0 %v73
    %253 = vmatmul.mubr.f32.gmra.mrb[0].mxu0 %v72
    %v254 = vpop.f32.mrb[0].mxu0
    %v255 = vadd.f32 %v145, %v254
    %v256 = vpop.f32.mrb[0].mxu0
    %v257 = vadd.f32 %v149, %v256
    %258 = vmatprep.mubr.f32.mxu0 %v75
    %259 = vmatmul.mubr.f32.gmra.mrb[0].mxu0 %v74
    %v260 = vpop.f32.mrb[0].mxu0
    %v261 = vadd.f32 %v145, %v260
    %v262 = vpop.f32.mrb[0].mxu0
    %v263 = vadd.f32 %v149, %v262
    %264 = vdwg.mxu0
    %265 = vst [vmem:[#allocation7] sm:$0xff] %v219
    %266 = vst [vmem:[#allocation7 + $0x8] sm:$0xff] %v221
    %267 = vst [vmem:[#allocation7 + $0x10] sm:$0xff] %v225
    %268 = vst [vmem:[#allocation7 + $0x18] sm:$0xff] %v227
    %269 = vst [vmem:[#allocation7 + $0x20] sm:$0xff] %v231
    %270 = vst [vmem:[#allocation7 + $0x28] sm:$0xff] %v233
    %271 = vst [vmem:[#allocation7 + $0x30] sm:$0xff] %v237
    %272 = vst [vmem:[#allocation7 + $0x38] sm:$0xff] %v239
    %273 = vst [vmem:[#allocation7 + $0x40] sm:$0xff] %v243
    %274 = vst [vmem:[#allocation7 + $0x48] sm:$0xff] %v245
    %275 = vst [vmem:[#allocation7 + $0x50] sm:$0xff] %v249
    %276 = vst [vmem:[#allocation7 + $0x58] sm:$0xff] %v251
    %277 = vst [vmem:[#allocation7 + $0x60] sm:$0xff] %v255
    %278 = vst [vmem:[#allocation7 + $0x68] sm:$0xff] %v257
    %279 = vst [vmem:[#allocation7 + $0x70] sm:$0xff] %v261
    %280 = vst [vmem:[#allocation7 + $0x78] sm:$0xff] %v263
    %v281 = vld [vmem:[#allocation5] sm:$0xff]
    %v282 = vld [vmem:[#allocation5 + $0x8] sm:$0xff]
    %v283 = vld [vmem:[#allocation5 + $0x10] sm:$0xff]
    %v284 = vld [vmem:[#allocation5 + $0x18] sm:$0xff]
    %v285 = vld [vmem:[#allocation5 + $0x20] sm:$0xff]
    %v286 = vld [vmem:[#allocation5 + $0x28] sm:$0xff]
    %v287 = vld [vmem:[#allocation5 + $0x30] sm:$0xff]
    %v288 = vld [vmem:[#allocation5 + $0x38] sm:$0xff]
    %v289 = vld [vmem:[#allocation5 + $0x40] sm:$0xff]
    %v290 = vld [vmem:[#allocation5 + $0x48] sm:$0xff]
    %v291 = vld [vmem:[#allocation5 + $0x50] sm:$0xff]
    %v292 = vld [vmem:[#allocation5 + $0x58] sm:$0xff]
    %v293 = vld [vmem:[#allocation5 + $0x60] sm:$0xff]
    %v294 = vld [vmem:[#allocation5 + $0x68] sm:$0xff]
    %v295 = vld [vmem:[#allocation5 + $0x70] sm:$0xff]
    %v296 = vld [vmem:[#allocation5 + $0x78] sm:$0xff]
    %v297 = vld [vmem:[#allocation5 + $0x80] sm:$0xff]
    %v298 = vld [vmem:[#allocation5 + $0x88] sm:$0xff]
    %v299 = vld [vmem:[#allocation5 + $0x90] sm:$0xff]
    %v300 = vld [vmem:[#allocation5 + $0x98] sm:$0xff]
    %v301 = vld [vmem:[#allocation5 + $0xa0] sm:$0xff]
    %v302 = vld [vmem:[#allocation5 + $0xa8] sm:$0xff]
    %v303 = vld [vmem:[#allocation5 + $0xb0] sm:$0xff]
    %v304 = vld [vmem:[#allocation5 + $0xb8] sm:$0xff]
    %v305 = vld [vmem:[#allocation5 + $0xc0] sm:$0xff]
    %v306 = vld [vmem:[#allocation5 + $0xc8] sm:$0xff]
    %v307 = vld [vmem:[#allocation5 + $0xd0] sm:$0xff]
    %v308 = vld [vmem:[#allocation5 + $0xd8] sm:$0xff]
    %v309 = vld [vmem:[#allocation5 + $0xe0] sm:$0xff]
    %v310 = vld [vmem:[#allocation5 + $0xe8] sm:$0xff]
    %v311 = vld [vmem:[#allocation5 + $0xf0] sm:$0xff]
    %v312 = vld [vmem:[#allocation5 + $0xf8] sm:$0xff]
    %v313 = vld [vmem:[#allocation5 + $0x100] sm:$0xff]
    %v314 = vld [vmem:[#allocation5 + $0x108] sm:$0xff]
    %v315 = vld [vmem:[#allocation5 + $0x110] sm:$0xff]
    %v316 = vld [vmem:[#allocation5 + $0x118] sm:$0xff]
    %v317 = vld [vmem:[#allocation5 + $0x120] sm:$0xff]
    %v318 = vld [vmem:[#allocation5 + $0x128] sm:$0xff]
    %v319 = vld [vmem:[#allocation5 + $0x130] sm:$0xff]
    %v320 = vld [vmem:[#allocation5 + $0x138] sm:$0xff]
    %v321 = vld [vmem:[#allocation5 + $0x140] sm:$0xff]
    %v322 = vld [vmem:[#allocation5 + $0x148] sm:$0xff]
    %v323 = vld [vmem:[#allocation5 + $0x150] sm:$0xff]
    %v324 = vld [vmem:[#allocation5 + $0x158] sm:$0xff]
    %v325 = vld [vmem:[#allocation5 + $0x160] sm:$0xff]
    %v326 = vld [vmem:[#allocation5 + $0x168] sm:$0xff]
    %v327 = vld [vmem:[#allocation5 + $0x170] sm:$0xff]
    %v328 = vld [vmem:[#allocation5 + $0x178] sm:$0xff]
    %v329 = vld [vmem:[#allocation5 + $0x180] sm:$0xff]
    %v330 = vld [vmem:[#allocation5 + $0x188] sm:$0xff]
    %v331 = vld [vmem:[#allocation5 + $0x190] sm:$0xff]
    %v332 = vld [vmem:[#allocation5 + $0x198] sm:$0xff]
    %v333 = vld [vmem:[#allocation5 + $0x1a0] sm:$0xff]
    %v334 = vld [vmem:[#allocation5 + $0x1a8] sm:$0xff]
    %v335 = vld [vmem:[#allocation5 + $0x1b0] sm:$0xff]
    %v336 = vld [vmem:[#allocation5 + $0x1b8] sm:$0xff]
    %v337 = vld [vmem:[#allocation5 + $0x1c0] sm:$0xff]
    %v338 = vld [vmem:[#allocation5 + $0x1c8] sm:$0xff]
    %v339 = vld [vmem:[#allocation5 + $0x1d0] sm:$0xff]
    %v340 = vld [vmem:[#allocation5 + $0x1d8] sm:$0xff]
    %v341 = vld [vmem:[#allocation5 + $0x1e0] sm:$0xff]
    %v342 = vld [vmem:[#allocation5 + $0x1e8] sm:$0xff]
    %v343 = vld [vmem:[#allocation5 + $0x1f0] sm:$0xff]
    %v344 = vld [vmem:[#allocation5 + $0x1f8] sm:$0xff]
    %v345 = vld [vmem:[#allocation7] sm:$0xff]
    %v346 = vld [vmem:[#allocation7 + $0x8] sm:$0xff]
    %347 = vmatprep.subr.mxu0 %v282
    %348 = vmatpush1.msra.mxu0 %v281
    %349 = vmatprep.subr.mxu0 %v284
    %350 = vmatpush1.msra.mxu0 %v283
    %351 = vmatprep.subr.mxu0 %v286
    %352 = vmatpush1.msra.mxu0 %v285
    %353 = vmatprep.subr.mxu0 %v288
    %354 = vmatpush1.msra.mxu0 %v287
    %355 = vmatprep.subr.mxu0 %v290
    %356 = vmatpush1.msra.mxu0 %v289
    %357 = vmatprep.subr.mxu0 %v292
    %358 = vmatpush1.msra.mxu0 %v291
    %359 = vmatprep.subr.mxu0 %v294
    %360 = vmatpush1.msra.mxu0 %v293
    %361 = vmatprep.subr.mxu0 %v296
    %362 = vmatpush1.msra.mxu0 %v295
    %363 = vmatprep.subr.mxu0 %v298
    %364 = vmatpush1.msra.mxu0 %v297
    %365 = vmatprep.subr.mxu0 %v300
    %366 = vmatpush1.msra.mxu0 %v299
    %367 = vmatprep.subr.mxu0 %v302
    %368 = vmatpush1.msra.mxu0 %v301
    %369 = vmatprep.subr.mxu0 %v304
    %370 = vmatpush1.msra.mxu0 %v303
    %371 = vmatprep.subr.mxu0 %v306
    %372 = vmatpush1.msra.mxu0 %v305
    %373 = vmatprep.subr.mxu0 %v308
    %374 = vmatpush1.msra.mxu0 %v307
    %375 = vmatprep.subr.mxu0 %v310
    %376 = vmatpush1.msra.mxu0 %v309
    %377 = vmatprep.subr.mxu0 %v312
    %378 = vmatpush1.msra.mxu0 %v311
    %379 = vmatprep.subr.mxu0 %v314
    %380 = vmatpush1.msra.mxu0 %v313
    %381 = vmatprep.subr.mxu0 %v316
    %382 = vmatpush1.msra.mxu0 %v315
    %383 = vmatprep.subr.mxu0 %v318
    %384 = vmatpush1.msra.mxu0 %v317
    %385 = vmatprep.subr.mxu0 %v320
    %386 = vmatpush1.msra.mxu0 %v319
    %387 = vmatprep.subr.mxu0 %v322
    %388 = vmatpush1.msra.mxu0 %v321
    %389 = vmatprep.subr.mxu0 %v324
    %390 = vmatpush1.msra.mxu0 %v323
    %391 = vmatprep.subr.mxu0 %v326
    %392 = vmatpush1.msra.mxu0 %v325
    %393 = vmatprep.subr.mxu0 %v328
    %394 = vmatpush1.msra.mxu0 %v327
    %395 = vmatprep.subr.mxu0 %v330
    %396 = vmatpush1.msra.mxu0 %v329
    %397 = vmatprep.subr.mxu0 %v332
    %398 = vmatpush1.msra.mxu0 %v331
    %399 = vmatprep.subr.mxu0 %v334
    %400 = vmatpush1.msra.mxu0 %v333
    %401 = vmatprep.subr.mxu0 %v336
    %402 = vmatpush1.msra.mxu0 %v335
    %403 = vmatprep.subr.mxu0 %v338
    %404 = vmatpush1.msra.mxu0 %v337
    %405 = vmatprep.subr.mxu0 %v340
    %406 = vmatpush1.msra.mxu0 %v339
    %407 = vmatprep.subr.mxu0 %v342
    %408 = vmatpush1.msra.mxu0 %v341
    %409 = vmatprep.subr.mxu0 %v344
    %410 = vmatpush1.msra.mxu0 %v343
    %411 = vmatprep.mubr.f32.mxu0 0.0
    %412 = vmatmul.mubr.f32.gmra.mrb[0].mxu0 0.0
    %v413 = vpop.f32.mrb[0].mxu0
    %v414 = vadd.f32 0.0, %v413
    %v415 = vpop.f32.mrb[0].mxu0
    %v416 = vadd.f32 0.0, %v415
    %417 = vdwg.mxu0
    %v418 = vadd.f32 %v345, %v414
    %v419 = vadd.f32 %v346, %v416
    %v420 = vmax.f32 %v418, 0.0
    %v421 = vmax.f32 %v419, 0.0
    %422 = vst [vmem:[#allocation7] sm:$0xff] %v420
    %423 = vst [vmem:[#allocation7 + $0x8] sm:$0xff] %v421
    %v424 = vld [vmem:[#allocation7 + $0x10] sm:$0xff]
    %v425 = vld [vmem:[#allocation7 + $0x18] sm:$0xff]
    %426 = vmatprep.subr.mxu0 %v282
    %427 = vmatpush1.msra.mxu0 %v281
    %428 = vmatprep.subr.mxu0 %v284
    %429 = vmatpush1.msra.mxu0 %v283
    %430 = vmatprep.subr.mxu0 %v286
    %431 = vmatpush1.msra.mxu0 %v285
    %432 = vmatprep.subr.mxu0 %v288
    %433 = vmatpush1.msra.mxu0 %v287
    %434 = vmatprep.subr.mxu0 %v290
    %435 = vmatpush1.msra.mxu0 %v289
    %436 = vmatprep.subr.mxu0 %v292
    %437 = vmatpush1.msra.mxu0 %v291
    %438 = vmatprep.subr.mxu0 %v294
    %439 = vmatpush1.msra.mxu0 %v293
    %440 = vmatprep.subr.mxu0 %v296
    %441 = vmatpush1.msra.mxu0 %v295
    %442 = vmatprep.subr.mxu0 %v298
    %443 = vmatpush1.msra.mxu0 %v297
    %444 = vmatprep.subr.mxu0 %v300
    %445 = vmatpush1.msra.mxu0 %v299
    %446 = vmatprep.subr.mxu0 %v302
    %447 = vmatpush1.msra.mxu0 %v301
    %448 = vmatprep.subr.mxu0 %v304
    %449 = vmatpush1.msra.mxu0 %v303
    %450 = vmatprep.subr.mxu0 %v306
    %451 = vmatpush1.msra.mxu0 %v305
    %452 = vmatprep.subr.mxu0 %v308
    %453 = vmatpush1.msra.mxu0 %v307
    %454 = vmatprep.subr.mxu0 %v310
    %455 = vmatpush1.msra.mxu0 %v309
    %456 = vmatprep.subr.mxu0 %v312
    %457 = vmatpush1.msra.mxu0 %v311
    %458 = vmatprep.subr.mxu0 %v314
    %459 = vmatpush1.msra.mxu0 %v313
    %460 = vmatprep.subr.mxu0 %v316
    %461 = vmatpush1.msra.mxu0 %v315
    %462 = vmatprep.subr.mxu0 %v318
    %463 = vmatpush1.msra.mxu0 %v317
    %464 = vmatprep.subr.mxu0 %v320
    %465 = vmatpush1.msra.mxu0 %v319
    %466 = vmatprep.subr.mxu0 %v322
    %467 = vmatpush1.msra.mxu0 %v321
    %468 = vmatprep.subr.mxu0 %v324
    %469 = vmatpush1.msra.mxu0 %v323
    %470 = vmatprep.subr.mxu0 %v326
    %471 = vmatpush1.msra.mxu0 %v325
    %472 = vmatprep.subr.mxu0 %v328
    %473 = vmatpush1.msra.mxu0 %v327
    %474 = vmatprep.subr.mxu0 %v330
    %475 = vmatpush1.msra.mxu0 %v329
    %476 = vmatprep.subr.mxu0 %v332
    %477 = vmatpush1.msra.mxu0 %v331
    %478 = vmatprep.subr.mxu0 %v334
    %479 = vmatpush1.msra.mxu0 %v333
    %480 = vmatprep.subr.mxu0 %v336
    %481 = vmatpush1.msra.mxu0 %v335
    %482 = vmatprep.subr.mxu0 %v338
    %483 = vmatpush1.msra.mxu0 %v337
    %484 = vmatprep.subr.mxu0 %v340
    %485 = vmatpush1.msra.mxu0 %v339
    %486 = vmatprep.subr.mxu0 %v342
    %487 = vmatpush1.msra.mxu0 %v341
    %488 = vmatprep.subr.mxu0 %v344
    %489 = vmatpush1.msra.mxu0 %v343
    %490 = vmatprep.mubr.f32.mxu0 %v421
    %491 = vmatmul.mubr.f32.gmra.mrb[0].mxu0 %v420
    %v492 = vpop.f32.mrb[0].mxu0
    %v493 = vadd.f32 0.0, %v492
    %v494 = vpop.f32.mrb[0].mxu0
    %v495 = vadd.f32 0.0, %v494
    %496 = vdwg.mxu0
    %v497 = vadd.f32 %v424, %v493
    %v498 = vadd.f32 %v425, %v495
    %v499 = vmax.f32 %v497, 0.0
    %v500 = vmax.f32 %v498, 0.0
    %501 = vst [vmem:[#allocation7 + $0x10] sm:$0xff] %v499
    %502 = vst [vmem:[#allocation7 + $0x18] sm:$0xff] %v500
    %v503 = vld [vmem:[#allocation7 + $0x20] sm:$0xff]
    %v504 = vld [vmem:[#allocation7 + $0x28] sm:$0xff]
    %505 = vmatprep.subr.mxu0 %v282
    %506 = vmatpush1.msra.mxu0 %v281
    %507 = vmatprep.subr.mxu0 %v284
    %508 = vmatpush1.msra.mxu0 %v283
    %509 = vmatprep.subr.mxu0 %v286
    %510 = vmatpush1.msra.mxu0 %v285
    %511 = vmatprep.subr.mxu0 %v288
    %512 = vmatpush1.msra.mxu0 %v287
    %513 = vmatprep.subr.mxu0 %v290
    %514 = vmatpush1.msra.mxu0 %v289
    %515 = vmatprep.subr.mxu0 %v292
    %516 = vmatpush1.msra.mxu0 %v291
    %517 = vmatprep.subr.mxu0 %v294
    %518 = vmatpush1.msra.mxu0 %v293
    %519 = vmatprep.subr.mxu0 %v296
    %520 = vmatpush1.msra.mxu0 %v295
    %521 = vmatprep.subr.mxu0 %v298
    %522 = vmatpush1.msra.mxu0 %v297
    %523 = vmatprep.subr.mxu0 %v300
    %524 = vmatpush1.msra.mxu0 %v299
    %525 = vmatprep.subr.mxu0 %v302
    %526 = vmatpush1.msra.mxu0 %v301
    %527 = vmatprep.subr.mxu0 %v304
    %528 = vmatpush1.msra.mxu0 %v303
    %529 = vmatprep.subr.mxu0 %v306
    %530 = vmatpush1.msra.mxu0 %v305
    %531 = vmatprep.subr.mxu0 %v308
    %532 = vmatpush1.msra.mxu0 %v307
    %533 = vmatprep.subr.mxu0 %v310
    %534 = vmatpush1.msra.mxu0 %v309
    %535 = vmatprep.subr.mxu0 %v312
    %536 = vmatpush1.msra.mxu0 %v311
    %537 = vmatprep.subr.mxu0 %v314
    %538 = vmatpush1.msra.mxu0 %v313
    %539 = vmatprep.subr.mxu0 %v316
    %540 = vmatpush1.msra.mxu0 %v315
    %541 = vmatprep.subr.mxu0 %v318
    %542 = vmatpush1.msra.mxu0 %v317
    %543 = vmatprep.subr.mxu0 %v320
    %544 = vmatpush1.msra.mxu0 %v319
    %545 = vmatprep.subr.mxu0 %v322
    %546 = vmatpush1.msra.mxu0 %v321
    %547 = vmatprep.subr.mxu0 %v324
    %548 = vmatpush1.msra.mxu0 %v323
    %549 = vmatprep.subr.mxu0 %v326
    %550 = vmatpush1.msra.mxu0 %v325
    %551 = vmatprep.subr.mxu0 %v328
    %552 = vmatpush1.msra.mxu0 %v327
    %553 = vmatprep.subr.mxu0 %v330
    %554 = vmatpush1.msra.mxu0 %v329
    %555 = vmatprep.subr.mxu0 %v332
    %556 = vmatpush1.msra.mxu0 %v331
    %557 = vmatprep.subr.mxu0 %v334
    %558 = vmatpush1.msra.mxu0 %v333
    %559 = vmatprep.subr.mxu0 %v336
    %560 = vmatpush1.msra.mxu0 %v335
    %561 = vmatprep.subr.mxu0 %v338
    %562 = vmatpush1.msra.mxu0 %v337
    %563 = vmatprep.subr.mxu0 %v340
    %564 = vmatpush1.msra.mxu0 %v339
    %565 = vmatprep.subr.mxu0 %v342
    %566 = vmatpush1.msra.mxu0 %v341
    %567 = vmatprep.subr.mxu0 %v344
    %568 = vmatpush1.msra.mxu0 %v343
    %569 = vmatprep.mubr.f32.mxu0 %v500
    %570 = vmatmul.mubr.f32.gmra.mrb[0].mxu0 %v499
    %v571 = vpop.f32.mrb[0].mxu0
    %v572 = vadd.f32 0.0, %v571
    %v573 = vpop.f32.mrb[0].mxu0
    %v574 = vadd.f32 0.0, %v573
    %575 = vdwg.mxu0
    %v576 = vadd.f32 %v503, %v572
    %v577 = vadd.f32 %v504, %v574
    %v578 = vmax.f32 %v576, 0.0
    %v579 = vmax.f32 %v577, 0.0
    %580 = vst [vmem:[#allocation7 + $0x20] sm:$0xff] %v578
    %581 = vst [vmem:[#allocation7 + $0x28] sm:$0xff] %v579
    %v582 = vld [vmem:[#allocation7 + $0x30] sm:$0xff]
    %v583 = vld [vmem:[#allocation7 + $0x38] sm:$0xff]
    %584 = vmatprep.subr.mxu0 %v282
    %585 = vmatpush1.msra.mxu0 %v281
    %586 = vmatprep.subr.mxu0 %v284
    %587 = vmatpush1.msra.mxu0 %v283
    %588 = vmatprep.subr.mxu0 %v286
    %589 = vmatpush1.msra.mxu0 %v285
    %590 = vmatprep.subr.mxu0 %v288
    %591 = vmatpush1.msra.mxu0 %v287
    %592 = vmatprep.subr.mxu0 %v290
    %593 = vmatpush1.msra.mxu0 %v289
    %594 = vmatprep.subr.mxu0 %v292
    %595 = vmatpush1.msra.mxu0 %v291
    %596 = vmatprep.subr.mxu0 %v294
    %597 = vmatpush1.msra.mxu0 %v293
    %598 = vmatprep.subr.mxu0 %v296
    %599 = vmatpush1.msra.mxu0 %v295
    %600 = vmatprep.subr.mxu0 %v298
    %601 = vmatpush1.msra.mxu0 %v297
    %602 = vmatprep.subr.mxu0 %v300
    %603 = vmatpush1.msra.mxu0 %v299
    %604 = vmatprep.subr.mxu0 %v302
    %605 = vmatpush1.msra.mxu0 %v301
    %606 = vmatprep.subr.mxu0 %v304
    %607 = vmatpush1.msra.mxu0 %v303
    %608 = vmatprep.subr.mxu0 %v306
    %609 = vmatpush1.msra.mxu0 %v305
    %610 = vmatprep.subr.mxu0 %v308
    %611 = vmatpush1.msra.mxu0 %v307
    %612 = vmatprep.subr.mxu0 %v310
    %613 = vmatpush1.msra.mxu0 %v309
    %614 = vmatprep.subr.mxu0 %v312
    %615 = vmatpush1.msra.mxu0 %v311
    %616 = vmatprep.subr.mxu0 %v314
    %617 = vmatpush1.msra.mxu0 %v313
    %618 = vmatprep.subr.mxu0 %v316
    %619 = vmatpush1.msra.mxu0 %v315
    %620 = vmatprep.subr.mxu0 %v318
    %621 = vmatpush1.msra.mxu0 %v317
    %622 = vmatprep.subr.mxu0 %v320
    %623 = vmatpush1.msra.mxu0 %v319
    %624 = vmatprep.subr.mxu0 %v322
    %625 = vmatpush1.msra.mxu0 %v321
    %626 = vmatprep.subr.mxu0 %v324
    %627 = vmatpush1.msra.mxu0 %v323
    %628 = vmatprep.subr.mxu0 %v326
    %629 = vmatpush1.msra.mxu0 %v325
    %630 = vmatprep.subr.mxu0 %v328
    %631 = vmatpush1.msra.mxu0 %v327
    %632 = vmatprep.subr.mxu0 %v330
    %633 = vmatpush1.msra.mxu0 %v329
    %634 = vmatprep.subr.mxu0 %v332
    %635 = vmatpush1.msra.mxu0 %v331
    %636 = vmatprep.subr.mxu0 %v334
    %637 = vmatpush1.msra.mxu0 %v333
    %638 = vmatprep.subr.mxu0 %v336
    %639 = vmatpush1.msra.mxu0 %v335
    %640 = vmatprep.subr.mxu0 %v338
    %641 = vmatpush1.msra.mxu0 %v337
    %642 = vmatprep.subr.mxu0 %v340
    %643 = vmatpush1.msra.mxu0 %v339
    %644 = vmatprep.subr.mxu0 %v342
    %645 = vmatpush1.msra.mxu0 %v341
    %646 = vmatprep.subr.mxu0 %v344
    %647 = vmatpush1.msra.mxu0 %v343
    %648 = vmatprep.mubr.f32.mxu0 %v579
    %649 = vmatmul.mubr.f32.gmra.mrb[0].mxu0 %v578
    %v650 = vpop.f32.mrb[0].mxu0
    %v651 = vadd.f32 0.0, %v650
    %v652 = vpop.f32.mrb[0].mxu0
    %v653 = vadd.f32 0.0, %v652
    %654 = vdwg.mxu0
    %v655 = vadd.f32 %v582, %v651
    %v656 = vadd.f32 %v583, %v653
    %v657 = vmax.f32 %v655, 0.0
    %v658 = vmax.f32 %v656, 0.0
    %659 = vst [vmem:[#allocation7 + $0x30] sm:$0xff] %v657
    %660 = vst [vmem:[#allocation7 + $0x38] sm:$0xff] %v658
    %v661 = vld [vmem:[#allocation7 + $0x40] sm:$0xff]
    %v662 = vld [vmem:[#allocation7 + $0x48] sm:$0xff]
    %663 = vmatprep.subr.mxu0 %v282
    %664 = vmatpush1.msra.mxu0 %v281
    %665 = vmatprep.subr.mxu0 %v284
    %666 = vmatpush1.msra.mxu0 %v283
    %667 = vmatprep.subr.mxu0 %v286
    %668 = vmatpush1.msra.mxu0 %v285
    %669 = vmatprep.subr.mxu0 %v288
    %670 = vmatpush1.msra.mxu0 %v287
    %671 = vmatprep.subr.mxu0 %v290
    %672 = vmatpush1.msra.mxu0 %v289
    %673 = vmatprep.subr.mxu0 %v292
    %674 = vmatpush1.msra.mxu0 %v291
    %675 = vmatprep.subr.mxu0 %v294
    %676 = vmatpush1.msra.mxu0 %v293
    %677 = vmatprep.subr.mxu0 %v296
    %678 = vmatpush1.msra.mxu0 %v295
    %679 = vmatprep.subr.mxu0 %v298
    %680 = vmatpush1.msra.mxu0 %v297
    %681 = vmatprep.subr.mxu0 %v300
    %682 = vmatpush1.msra.mxu0 %v299
    %683 = vmatprep.subr.mxu0 %v302
    %684 = vmatpush1.msra.mxu0 %v301
    %685 = vmatprep.subr.mxu0 %v304
    %686 = vmatpush1.msra.mxu0 %v303
    %687 = vmatprep.subr.mxu0 %v306
    %688 = vmatpush1.msra.mxu0 %v305
    %689 = vmatprep.subr.mxu0 %v308
    %690 = vmatpush1.msra.mxu0 %v307
    %691 = vmatprep.subr.mxu0 %v310
    %692 = vmatpush1.msra.mxu0 %v309
    %693 = vmatprep.subr.mxu0 %v312
    %694 = vmatpush1.msra.mxu0 %v311
    %695 = vmatprep.subr.mxu0 %v314
    %696 = vmatpush1.msra.mxu0 %v313
    %697 = vmatprep.subr.mxu0 %v316
    %698 = vmatpush1.msra.mxu0 %v315
    %699 = vmatprep.subr.mxu0 %v318
    %700 = vmatpush1.msra.mxu0 %v317
    %701 = vmatprep.subr.mxu0 %v320
    %702 = vmatpush1.msra.mxu0 %v319
    %703 = vmatprep.subr.mxu0 %v322
    %704 = vmatpush1.msra.mxu0 %v321
    %705 = vmatprep.subr.mxu0 %v324
    %706 = vmatpush1.msra.mxu0 %v323
    %707 = vmatprep.subr.mxu0 %v326
    %708 = vmatpush1.msra.mxu0 %v325
    %709 = vmatprep.subr.mxu0 %v328
    %710 = vmatpush1.msra.mxu0 %v327
    %711 = vmatprep.subr.mxu0 %v330
    %712 = vmatpush1.msra.mxu0 %v329
    %713 = vmatprep.subr.mxu0 %v332
    %714 = vmatpush1.msra.mxu0 %v331
    %715 = vmatprep.subr.mxu0 %v334
    %716 = vmatpush1.msra.mxu0 %v333
    %717 = vmatprep.subr.mxu0 %v336
    %718 = vmatpush1.msra.mxu0 %v335
    %719 = vmatprep.subr.mxu0 %v338
    %720 = vmatpush1.msra.mxu0 %v337
    %721 = vmatprep.subr.mxu0 %v340
    %722 = vmatpush1.msra.mxu0 %v339
    %723 = vmatprep.subr.mxu0 %v342
    %724 = vmatpush1.msra.mxu0 %v341
    %725 = vmatprep.subr.mxu0 %v344
    %726 = vmatpush1.msra.mxu0 %v343
    %727 = vmatprep.mubr.f32.mxu0 %v658
    %728 = vmatmul.mubr.f32.gmra.mrb[0].mxu0 %v657
    %v729 = vpop.f32.mrb[0].mxu0
    %v730 = vadd.f32 0.0, %v729
    %v731 = vpop.f32.mrb[0].mxu0
    %v732 = vadd.f32 0.0, %v731
    %733 = vdwg.mxu0
    %v734 = vadd.f32 %v661, %v730
    %v735 = vadd.f32 %v662, %v732
    %v736 = vmax.f32 %v734, 0.0
    %v737 = vmax.f32 %v735, 0.0
    %738 = vst [vmem:[#allocation7 + $0x40] sm:$0xff] %v736
    %739 = vst [vmem:[#allocation7 + $0x48] sm:$0xff] %v737
    %v740 = vld [vmem:[#allocation7 + $0x50] sm:$0xff]
    %v741 = vld [vmem:[#allocation7 + $0x58] sm:$0xff]
    %742 = vmatprep.subr.mxu0 %v282
    %743 = vmatpush1.msra.mxu0 %v281
    %744 = vmatprep.subr.mxu0 %v284
    %745 = vmatpush1.msra.mxu0 %v283
    %746 = vmatprep.subr.mxu0 %v286
    %747 = vmatpush1.msra.mxu0 %v285
    %748 = vmatprep.subr.mxu0 %v288
    %749 = vmatpush1.msra.mxu0 %v287
    %750 = vmatprep.subr.mxu0 %v290
    %751 = vmatpush1.msra.mxu0 %v289
    %752 = vmatprep.subr.mxu0 %v292
    %753 = vmatpush1.msra.mxu0 %v291
    %754 = vmatprep.subr.mxu0 %v294
    %755 = vmatpush1.msra.mxu0 %v293
    %756 = vmatprep.subr.mxu0 %v296
    %757 = vmatpush1.msra.mxu0 %v295
    %758 = vmatprep.subr.mxu0 %v298
    %759 = vmatpush1.msra.mxu0 %v297
    %760 = vmatprep.subr.mxu0 %v300
    %761 = vmatpush1.msra.mxu0 %v299
    %762 = vmatprep.subr.mxu0 %v302
    %763 = vmatpush1.msra.mxu0 %v301
    %764 = vmatprep.subr.mxu0 %v304
    %765 = vmatpush1.msra.mxu0 %v303
    %766 = vmatprep.subr.mxu0 %v306
    %767 = vmatpush1.msra.mxu0 %v305
    %768 = vmatprep.subr.mxu0 %v308
    %769 = vmatpush1.msra.mxu0 %v307
    %770 = vmatprep.subr.mxu0 %v310
    %771 = vmatpush1.msra.mxu0 %v309
    %772 = vmatprep.subr.mxu0 %v312
    %773 = vmatpush1.msra.mxu0 %v311
    %774 = vmatprep.subr.mxu0 %v314
    %775 = vmatpush1.msra.mxu0 %v313
    %776 = vmatprep.subr.mxu0 %v316
    %777 = vmatpush1.msra.mxu0 %v315
    %778 = vmatprep.subr.mxu0 %v318
    %779 = vmatpush1.msra.mxu0 %v317
    %780 = vmatprep.subr.mxu0 %v320
    %781 = vmatpush1.msra.mxu0 %v319
    %782 = vmatprep.subr.mxu0 %v322
    %783 = vmatpush1.msra.mxu0 %v321
    %784 = vmatprep.subr.mxu0 %v324
    %785 = vmatpush1.msra.mxu0 %v323
    %786 = vmatprep.subr.mxu0 %v326
    %787 = vmatpush1.msra.mxu0 %v325
    %788 = vmatprep.subr.mxu0 %v328
    %789 = vmatpush1.msra.mxu0 %v327
    %790 = vmatprep.subr.mxu0 %v330
    %791 = vmatpush1.msra.mxu0 %v329
    %792 = vmatprep.subr.mxu0 %v332
    %793 = vmatpush1.msra.mxu0 %v331
    %794 = vmatprep.subr.mxu0 %v334
    %795 = vmatpush1.msra.mxu0 %v333
    %796 = vmatprep.subr.mxu0 %v336
    %797 = vmatpush1.msra.mxu0 %v335
    %798 = vmatprep.subr.mxu0 %v338
    %799 = vmatpush1.msra.mxu0 %v337
    %800 = vmatprep.subr.mxu0 %v340
    %801 = vmatpush1.msra.mxu0 %v339
    %802 = vmatprep.subr.mxu0 %v342
    %803 = vmatpush1.msra.mxu0 %v341
    %804 = vmatprep.subr.mxu0 %v344
    %805 = vmatpush1.msra.mxu0 %v343
    %806 = vmatprep.mubr.f32.mxu0 %v737
    %807 = vmatmul.mubr.f32.gmra.mrb[0].mxu0 %v736
    %v808 = vpop.f32.mrb[0].mxu0
    %v809 = vadd.f32 0.0, %v808
    %v810 = vpop.f32.mrb[0].mxu0
    %v811 = vadd.f32 0.0, %v810
    %812 = vdwg.mxu0
    %v813 = vadd.f32 %v740, %v809
    %v814 = vadd.f32 %v741, %v811
    %v815 = vmax.f32 %v813, 0.0
    %v816 = vmax.f32 %v814, 0.0
    %817 = vst [vmem:[#allocation7 + $0x50] sm:$0xff] %v815
    %818 = vst [vmem:[#allocation7 + $0x58] sm:$0xff] %v816
    %v819 = vld [vmem:[#allocation7 + $0x60] sm:$0xff]
    %v820 = vld [vmem:[#allocation7 + $0x68] sm:$0xff]
    %821 = vmatprep.subr.mxu0 %v282
    %822 = vmatpush1.msra.mxu0 %v281
    %823 = vmatprep.subr.mxu0 %v284
    %824 = vmatpush1.msra.mxu0 %v283
    %825 = vmatprep.subr.mxu0 %v286
    %826 = vmatpush1.msra.mxu0 %v285
    %827 = vmatprep.subr.mxu0 %v288
    %828 = vmatpush1.msra.mxu0 %v287
    %829 = vmatprep.subr.mxu0 %v290
    %830 = vmatpush1.msra.mxu0 %v289
    %831 = vmatprep.subr.mxu0 %v292
    %832 = vmatpush1.msra.mxu0 %v291
    %833 = vmatprep.subr.mxu0 %v294
    %834 = vmatpush1.msra.mxu0 %v293
    %835 = vmatprep.subr.mxu0 %v296
    %836 = vmatpush1.msra.mxu0 %v295
    %837 = vmatprep.subr.mxu0 %v298
    %838 = vmatpush1.msra.mxu0 %v297
    %839 = vmatprep.subr.mxu0 %v300
    %840 = vmatpush1.msra.mxu0 %v299
    %841 = vmatprep.subr.mxu0 %v302
    %842 = vmatpush1.msra.mxu0 %v301
    %843 = vmatprep.subr.mxu0 %v304
    %844 = vmatpush1.msra.mxu0 %v303
    %845 = vmatprep.subr.mxu0 %v306
    %846 = vmatpush1.msra.mxu0 %v305
    %847 = vmatprep.subr.mxu0 %v308
    %848 = vmatpush1.msra.mxu0 %v307
    %849 = vmatprep.subr.mxu0 %v310
    %850 = vmatpush1.msra.mxu0 %v309
    %851 = vmatprep.subr.mxu0 %v312
    %852 = vmatpush1.msra.mxu0 %v311
    %853 = vmatprep.subr.mxu0 %v314
    %854 = vmatpush1.msra.mxu0 %v313
    %855 = vmatprep.subr.mxu0 %v316
    %856 = vmatpush1.msra.mxu0 %v315
    %857 = vmatprep.subr.mxu0 %v318
    %858 = vmatpush1.msra.mxu0 %v317
    %859 = vmatprep.subr.mxu0 %v320
    %860 = vmatpush1.msra.mxu0 %v319
    %861 = vmatprep.subr.mxu0 %v322
    %862 = vmatpush1.msra.mxu0 %v321
    %863 = vmatprep.subr.mxu0 %v324
    %864 = vmatpush1.msra.mxu0 %v323
    %865 = vmatprep.subr.mxu0 %v326
    %866 = vmatpush1.msra.mxu0 %v325
    %867 = vmatprep.subr.mxu0 %v328
    %868 = vmatpush1.msra.mxu0 %v327
    %869 = vmatprep.subr.mxu0 %v330
    %870 = vmatpush1.msra.mxu0 %v329
    %871 = vmatprep.subr.mxu0 %v332
    %872 = vmatpush1.msra.mxu0 %v331
    %873 = vmatprep.subr.mxu0 %v334
    %874 = vmatpush1.msra.mxu0 %v333
    %875 = vmatprep.subr.mxu0 %v336
    %876 = vmatpush1.msra.mxu0 %v335
    %877 = vmatprep.subr.mxu0 %v338
    %878 = vmatpush1.msra.mxu0 %v337
    %879 = vmatprep.subr.mxu0 %v340
    %880 = vmatpush1.msra.mxu0 %v339
    %881 = vmatprep.subr.mxu0 %v342
    %882 = vmatpush1.msra.mxu0 %v341
    %883 = vmatprep.subr.mxu0 %v344
    %884 = vmatpush1.msra.mxu0 %v343
    %885 = vmatprep.mubr.f32.mxu0 %v816
    %886 = vmatmul.mubr.f32.gmra.mrb[0].mxu0 %v815
    %v887 = vpop.f32.mrb[0].mxu0
    %v888 = vadd.f32 0.0, %v887
    %v889 = vpop.f32.mrb[0].mxu0
    %v890 = vadd.f32 0.0, %v889
    %891 = vdwg.mxu0
    %v892 = vadd.f32 %v819, %v888
    %v893 = vadd.f32 %v820, %v890
    %v894 = vmax.f32 %v892, 0.0
    %v895 = vmax.f32 %v893, 0.0
    %896 = vst [vmem:[#allocation7 + $0x60] sm:$0xff] %v894
    %897 = vst [vmem:[#allocation7 + $0x68] sm:$0xff] %v895
    %v898 = vld [vmem:[#allocation7 + $0x70] sm:$0xff]
    %v899 = vld [vmem:[#allocation7 + $0x78] sm:$0xff]
    %900 = vmatprep.subr.mxu0 %v282
    %901 = vmatpush1.msra.mxu0 %v281
    %902 = vmatprep.subr.mxu0 %v284
    %903 = vmatpush1.msra.mxu0 %v283
    %904 = vmatprep.subr.mxu0 %v286
    %905 = vmatpush1.msra.mxu0 %v285
    %906 = vmatprep.subr.mxu0 %v288
    %907 = vmatpush1.msra.mxu0 %v287
    %908 = vmatprep.subr.mxu0 %v290
    %909 = vmatpush1.msra.mxu0 %v289
    %910 = vmatprep.subr.mxu0 %v292
    %911 = vmatpush1.msra.mxu0 %v291
    %912 = vmatprep.subr.mxu0 %v294
    %913 = vmatpush1.msra.mxu0 %v293
    %914 = vmatprep.subr.mxu0 %v296
    %915 = vmatpush1.msra.mxu0 %v295
    %916 = vmatprep.subr.mxu0 %v298
    %917 = vmatpush1.msra.mxu0 %v297
    %918 = vmatprep.subr.mxu0 %v300
    %919 = vmatpush1.msra.mxu0 %v299
    %920 = vmatprep.subr.mxu0 %v302
    %921 = vmatpush1.msra.mxu0 %v301
    %922 = vmatprep.subr.mxu0 %v304
    %923 = vmatpush1.msra.mxu0 %v303
    %924 = vmatprep.subr.mxu0 %v306
    %925 = vmatpush1.msra.mxu0 %v305
    %926 = vmatprep.subr.mxu0 %v308
    %927 = vmatpush1.msra.mxu0 %v307
    %928 = vmatprep.subr.mxu0 %v310
    %929 = vmatpush1.msra.mxu0 %v309
    %930 = vmatprep.subr.mxu0 %v312
    %931 = vmatpush1.msra.mxu0 %v311
    %932 = vmatprep.subr.mxu0 %v314
    %933 = vmatpush1.msra.mxu0 %v313
    %934 = vmatprep.subr.mxu0 %v316
    %935 = vmatpush1.msra.mxu0 %v315
    %936 = vmatprep.subr.mxu0 %v318
    %937 = vmatpush1.msra.mxu0 %v317
    %938 = vmatprep.subr.mxu0 %v320
    %939 = vmatpush1.msra.mxu0 %v319
    %940 = vmatprep.subr.mxu0 %v322
    %941 = vmatpush1.msra.mxu0 %v321
    %942 = vmatprep.subr.mxu0 %v324
    %943 = vmatpush1.msra.mxu0 %v323
    %944 = vmatprep.subr.mxu0 %v326
    %945 = vmatpush1.msra.mxu0 %v325
    %946 = vmatprep.subr.mxu0 %v328
    %947 = vmatpush1.msra.mxu0 %v327
    %948 = vmatprep.subr.mxu0 %v330
    %949 = vmatpush1.msra.mxu0 %v329
    %950 = vmatprep.subr.mxu0 %v332
    %951 = vmatpush1.msra.mxu0 %v331
    %952 = vmatprep.subr.mxu0 %v334
    %953 = vmatpush1.msra.mxu0 %v333
    %954 = vmatprep.subr.mxu0 %v336
    %955 = vmatpush1.msra.mxu0 %v335
    %956 = vmatprep.subr.mxu0 %v338
    %957 = vmatpush1.msra.mxu0 %v337
    %958 = vmatprep.subr.mxu0 %v340
    %959 = vmatpush1.msra.mxu0 %v339
    %960 = vmatprep.subr.mxu0 %v342
    %961 = vmatpush1.msra.mxu0 %v341
    %962 = vmatprep.subr.mxu0 %v344
    %963 = vmatpush1.msra.mxu0 %v343
    %964 = vmatprep.mubr.f32.mxu0 %v895
    %965 = vmatmul.mubr.f32.gmra.mrb[0].mxu0 %v894
    %v966 = vpop.f32.mrb[0].mxu0
    %v967 = vadd.f32 0.0, %v966
    %v968 = vpop.f32.mrb[0].mxu0
    %v969 = vadd.f32 0.0, %v968
    %970 = vdwg.mxu0
    %v971 = vadd.f32 %v898, %v967
    %v972 = vadd.f32 %v899, %v969
    %v973 = vmax.f32 %v971, 0.0
    %v974 = vmax.f32 %v972, 0.0
    %975 = vst [vmem:[#allocation7 + $0x70] sm:$0xff] %v973
    %976 = vst [vmem:[#allocation7 + $0x78] sm:$0xff] %v974
    %v977 = vld [vmem:[%s0] sm:$0xff]
    %v978 = vld [vmem:[%s0 + $0x8] sm:$0xff]
    %v979 = vld [vmem:[%s0 + $0x10] sm:$0xff]
    %v980 = vld [vmem:[%s0 + $0x18] sm:$0xff]
    %v981 = vld [vmem:[%s0 + $0x20] sm:$0xff]
    %v982 = vld [vmem:[%s0 + $0x28] sm:$0xff]
    %v983 = vld [vmem:[%s0 + $0x30] sm:$0xff]
    %v984 = vld [vmem:[%s0 + $0x38] sm:$0xff]
    %v985 = vld [vmem:[%s0 + $0x40] sm:$0xff]
    %v986 = vld [vmem:[%s0 + $0x48] sm:$0xff]
    %v987 = vld [vmem:[%s0 + $0x50] sm:$0xff]
    %v988 = vld [vmem:[%s0 + $0x58] sm:$0xff]
    %v989 = vld [vmem:[%s0 + $0x60] sm:$0xff]
    %v990 = vld [vmem:[%s0 + $0x68] sm:$0xff]
    %v991 = vld [vmem:[%s0 + $0x70] sm:$0xff]
    %v992 = vld [vmem:[%s0 + $0x78] sm:$0xff]
    %v993 = vld [vmem:[%s4] sm:$0xff]
    %v994 = vld [vmem:[%s4 + $0x8] sm:$0xff]
    %v995 = vld [vmem:[%s4 + $0x10] sm:$0xff]
    %v996 = vld [vmem:[%s4 + $0x18] sm:$0xff]
    %v997 = vld [vmem:[%s4 + $0x20] sm:$0xff]
    %v998 = vld [vmem:[%s4 + $0x28] sm:$0xff]
    %v999 = vld [vmem:[%s4 + $0x30] sm:$0xff]
    %v1000 = vld [vmem:[%s4 + $0x38] sm:$0xff]
    %v1001 = vld [vmem:[%s4 + $0x40] sm:$0xff]
    %v1002 = vld [vmem:[%s4 + $0x48] sm:$0xff]
    %v1003 = vld [vmem:[%s4 + $0x50] sm:$0xff]
    %v1004 = vld [vmem:[%s4 + $0x58] sm:$0xff]
    %v1005 = vld [vmem:[%s4 + $0x60] sm:$0xff]
    %v1006 = vld [vmem:[%s4 + $0x68] sm:$0xff]
    %v1007 = vld [vmem:[%s4 + $0x70] sm:$0xff]
    %v1008 = vld [vmem:[%s4 + $0x78] sm:$0xff]
    %v1009 = vld [vmem:[%s4 + $0x80] sm:$0xff]
    %v1010 = vld [vmem:[%s4 + $0x88] sm:$0xff]
    %v1011 = vld [vmem:[%s4 + $0x90] sm:$0xff]
    %v1012 = vld [vmem:[%s4 + $0x98] sm:$0xff]
    %v1013 = vld [vmem:[%s4 + $0xa0] sm:$0xff]
    %v1014 = vld [vmem:[%s4 + $0xa8] sm:$0xff]
    %v1015 = vld [vmem:[%s4 + $0xb0] sm:$0xff]
    %v1016 = vld [vmem:[%s4 + $0xb8] sm:$0xff]
    %v1017 = vld [vmem:[%s4 + $0xc0] sm:$0xff]
    %v1018 = vld [vmem:[%s4 + $0xc8] sm:$0xff]
    %v1019 = vld [vmem:[%s4 + $0xd0] sm:$0xff]
    %v1020 = vld [vmem:[%s4 + $0xd8] sm:$0xff]
    %v1021 = vld [vmem:[%s4 + $0xe0] sm:$0xff]
    %v1022 = vld [vmem:[%s4 + $0xe8] sm:$0xff]
    %v1023 = vld [vmem:[%s4 + $0xf0] sm:$0xff]
    %v1024 = vld [vmem:[%s4 + $0xf8] sm:$0xff]
    %v1025 = vld [vmem:[%s5] sm:$0x1]
    %v1027 = vlaneseq
    %v1028 = vshrl.u32 %v1027, 7
    %v1029 = vsub.s32 0, %v1028
    %v1030 = vrot.slane %v1025, %v1029
    %1032 = vmatprep.subr.mxu0 0.0
    %1033 = vmatpush1.msra.mxu0 %v993
    %1034 = vmatprep.subr.mxu0 0.0
    %1035 = vmatpush1.msra.mxu0 %v994
    %1036 = vmatprep.subr.mxu0 0.0
    %1037 = vmatpush1.msra.mxu0 %v995
    %1038 = vmatprep.subr.mxu0 0.0
    %1039 = vmatpush1.msra.mxu0 %v996
    %1040 = vmatprep.subr.mxu0 0.0
    %1041 = vmatpush1.msra.mxu0 %v997
    %1042 = vmatprep.subr.mxu0 0.0
    %1043 = vmatpush1.msra.mxu0 %v998
    %1044 = vmatprep.subr.mxu0 0.0
    %1045 = vmatpush1.msra.mxu0 %v999
    %1046 = vmatprep.subr.mxu0 0.0
    %1047 = vmatpush1.msra.mxu0 %v1000
    %1048 = vmatprep.subr.mxu0 0.0
    %1049 = vmatpush1.msra.mxu0 %v1001
    %1050 = vmatprep.subr.mxu0 0.0
    %1051 = vmatpush1.msra.mxu0 %v1002
    %1052 = vmatprep.subr.mxu0 0.0
    %1053 = vmatpush1.msra.mxu0 %v1003
    %1054 = vmatprep.subr.mxu0 0.0
    %1055 = vmatpush1.msra.mxu0 %v1004
    %1056 = vmatprep.subr.mxu0 0.0
    %1057 = vmatpush1.msra.mxu0 %v1005
    %1058 = vmatprep.subr.mxu0 0.0
    %1059 = vmatpush1.msra.mxu0 %v1006
    %1060 = vmatprep.subr.mxu0 0.0
    %1061 = vmatpush1.msra.mxu0 %v1007
    %1062 = vmatprep.subr.mxu0 0.0
    %1063 = vmatpush1.msra.mxu0 %v1008
    %1064 = vmatprep.subr.mxu0 0.0
    %1065 = vmatpush1.msra.mxu0 %v1009
    %1066 = vmatprep.subr.mxu0 0.0
    %1067 = vmatpush1.msra.mxu0 %v1010
    %1068 = vmatprep.subr.mxu0 0.0
    %1069 = vmatpush1.msra.mxu0 %v1011
    %1070 = vmatprep.subr.mxu0 0.0
    %1071 = vmatpush1.msra.mxu0 %v1012
    %1072 = vmatprep.subr.mxu0 0.0
    %1073 = vmatpush1.msra.mxu0 %v1013
    %1074 = vmatprep.subr.mxu0 0.0
    %1075 = vmatpush1.msra.mxu0 %v1014
    %1076 = vmatprep.subr.mxu0 0.0
    %1077 = vmatpush1.msra.mxu0 %v1015
    %1078 = vmatprep.subr.mxu0 0.0
    %1079 = vmatpush1.msra.mxu0 %v1016
    %1080 = vmatprep.subr.mxu0 0.0
    %1081 = vmatpush1.msra.mxu0 %v1017
    %1082 = vmatprep.subr.mxu0 0.0
    %1083 = vmatpush1.msra.mxu0 %v1018
    %1084 = vmatprep.subr.mxu0 0.0
    %1085 = vmatpush1.msra.mxu0 %v1019
    %1086 = vmatprep.subr.mxu0 0.0
    %1087 = vmatpush1.msra.mxu0 %v1020
    %1088 = vmatprep.subr.mxu0 0.0
    %1089 = vmatpush1.msra.mxu0 %v1021
    %1090 = vmatprep.subr.mxu0 0.0
    %1091 = vmatpush1.msra.mxu0 %v1022
    %1092 = vmatprep.subr.mxu0 0.0
    %1093 = vmatpush1.msra.mxu0 %v1023
    %1094 = vmatprep.subr.mxu0 0.0
    %1095 = vmatpush1.msra.mxu0 %v1024
    %1096 = vmatprep.mubr.f32.mxu0 %v978
    %1097 = vmatmul.mubr.f32.gmra.mrb[0].mxu0 %v977
    %v1098 = vpop.f32.mrb[0].mxu0
    %v1099 = vadd.f32 %v1030, %v1098
    %v1100 = vpop.f32.mrb[0].mxu0
    %1101 = vmatprep.mubr.f32.mxu0 %v980
    %1102 = vmatmul.mubr.f32.gmra.mrb[0].mxu0 %v979
    %v1103 = vpop.f32.mrb[0].mxu0
    %v1104 = vadd.f32 %v1030, %v1103
    %v1105 = vpop.f32.mrb[0].mxu0
    %1106 = vmatprep.mubr.f32.mxu0 %v982
    %1107 = vmatmul.mubr.f32.gmra.mrb[0].mxu0 %v981
    %v1108 = vpop.f32.mrb[0].mxu0
    %v1109 = vadd.f32 %v1030, %v1108
    %v1110 = vpop.f32.mrb[0].mxu0
    %1111 = vmatprep.mubr.f32.mxu0 %v984
    %1112 = vmatmul.mubr.f32.gmra.mrb[0].mxu0 %v983
    %v1113 = vpop.f32.mrb[0].mxu0
    %v1114 = vadd.f32 %v1030, %v1113
    %v1115 = vpop.f32.mrb[0].mxu0
    %1116 = vmatprep.mubr.f32.mxu0 %v986
    %1117 = vmatmul.mubr.f32.gmra.mrb[0].mxu0 %v985
    %v1118 = vpop.f32.mrb[0].mxu0
    %v1119 = vadd.f32 %v1030, %v1118
    %v1120 = vpop.f32.mrb[0].mxu0
    %1121 = vmatprep.mubr.f32.mxu0 %v988
    %1122 = vmatmul.mubr.f32.gmra.mrb[0].mxu0 %v987
    %v1123 = vpop.f32.mrb[0].mxu0
    %v1124 = vadd.f32 %v1030, %v1123
    %v1125 = vpop.f32.mrb[0].mxu0
    %1126 = vmatprep.mubr.f32.mxu0 %v990
    %1127 = vmatmul.mubr.f32.gmra.mrb[0].mxu0 %v989
    %v1128 = vpop.f32.mrb[0].mxu0
    %v1129 = vadd.f32 %v1030, %v1128
    %v1130 = vpop.f32.mrb[0].mxu0
    %1131 = vmatprep.mubr.f32.mxu0 %v992
    %1132 = vmatmul.mubr.f32.gmra.mrb[0].mxu0 %v991
    %v1133 = vpop.f32.mrb[0].mxu0
    %v1134 = vadd.f32 %v1030, %v1133
    %v1135 = vpop.f32.mrb[0].mxu0
    %1136 = vdwg.mxu0
    %v1137 = vmax.f32 %v1099, 0.0
    %v1138 = vmax.f32 %v1104, 0.0
    %v1139 = vmax.f32 %v1109, 0.0
    %v1140 = vmax.f32 %v1114, 0.0
    %v1141 = vmax.f32 %v1119, 0.0
    %v1142 = vmax.f32 %v1124, 0.0
    %v1143 = vmax.f32 %v1129, 0.0
    %v1144 = vmax.f32 %v1134, 0.0
    %v1145 = vld [vmem:[%s6] sm:$0xff]
    %v1146 = vld [vmem:[%s6 + $0x8] sm:$0xff]
    %v1147 = vld [vmem:[%s6 + $0x10] sm:$0xff]
    %v1148 = vld [vmem:[%s6 + $0x18] sm:$0xff]
    %v1149 = vld [vmem:[%s6 + $0x20] sm:$0xff]
    %v1150 = vld [vmem:[%s6 + $0x28] sm:$0xff]
    %v1151 = vld [vmem:[%s6 + $0x30] sm:$0xff]
    %v1152 = vld [vmem:[%s6 + $0x38] sm:$0xff]
    %v1153 = vld [vmem:[%s7] sm:$0x1]
    %v1155 = vlaneseq
    %v1156 = vshrl.u32 %v1155, 7
    %v1157 = vsub.s32 0, %v1156
    %v1158 = vrot.slane %v1153, %v1157
    %vm1160 = vcmask 523264
    %v1162 = vsel %vm1160, %v1137, 0
    %v1165 = vsel %vm1160, %v1138, 0
    %v1168 = vsel %vm1160, %v1139, 0
    %v1171 = vsel %vm1160, %v1140, 0
    %v1174 = vsel %vm1160, %v1141, 0
    %v1177 = vsel %vm1160, %v1142, 0
    %v1180 = vsel %vm1160, %v1143, 0
    %v1183 = vsel %vm1160, %v1144, 0
    %1185 = vmatprep.subr.mxu0 0.0
    %1186 = vmatpush1.msra.mxu0 %v1145
    %1187 = vmatprep.subr.mxu0 0.0
    %1188 = vmatpush1.msra.mxu0 %v1146
    %1189 = vmatprep.subr.mxu0 0.0
    %1190 = vmatpush1.msra.mxu0 %v1147
    %1191 = vmatprep.subr.mxu0 0.0
    %1192 = vmatpush1.msra.mxu0 %v1148
    %1193 = vmatprep.subr.mxu0 0.0
    %1194 = vmatpush1.msra.mxu0 %v1149
    %1195 = vmatprep.subr.mxu0 0.0
    %1196 = vmatpush1.msra.mxu0 %v1150
    %1197 = vmatprep.subr.mxu0 0.0
    %1198 = vmatpush1.msra.mxu0 %v1151
    %1199 = vmatprep.subr.mxu0 0.0
    %1200 = vmatpush1.msra.mxu0 %v1152
    %1201 = vmatprep.subr.mxu0 0.0
    %1202 = vmatpush1.msra.mxu0 0.0
    %1203 = vmatprep.subr.mxu0 0.0
    %1204 = vmatpush1.msra.mxu0 0.0
    %1205 = vmatprep.subr.mxu0 0.0
    %1206 = vmatpush1.msra.mxu0 0.0
    %1207 = vmatprep.subr.mxu0 0.0
    %1208 = vmatpush1.msra.mxu0 0.0
    %1209 = vmatprep.subr.mxu0 0.0
    %1210 = vmatpush1.msra.mxu0 0.0
    %1211 = vmatprep.subr.mxu0 0.0
    %1212 = vmatpush1.msra.mxu0 0.0
    %1213 = vmatprep.subr.mxu0 0.0
    %1214 = vmatpush1.msra.mxu0 0.0
    %1215 = vmatprep.subr.mxu0 0.0
    %1216 = vmatpush1.msra.mxu0 0.0
    %1217 = vmatprep.subr.mxu0 0.0
    %1218 = vmatpush1.msra.mxu0 0.0
    %1219 = vmatprep.subr.mxu0 0.0
    %1220 = vmatpush1.msra.mxu0 0.0
    %1221 = vmatprep.subr.mxu0 0.0
    %1222 = vmatpush1.msra.mxu0 0.0
    %1223 = vmatprep.subr.mxu0 0.0
    %1224 = vmatpush1.msra.mxu0 0.0
    %1225 = vmatprep.subr.mxu0 0.0
    %1226 = vmatpush1.msra.mxu0 0.0
    %1227 = vmatprep.subr.mxu0 0.0
    %1228 = vmatpush1.msra.mxu0 0.0
    %1229 = vmatprep.subr.mxu0 0.0
    %1230 = vmatpush1.msra.mxu0 0.0
    %1231 = vmatprep.subr.mxu0 0.0
    %1232 = vmatpush1.msra.mxu0 0.0
    %1233 = vmatprep.subr.mxu0 0.0
    %1234 = vmatpush1.msra.mxu0 0.0
    %1235 = vmatprep.subr.mxu0 0.0
    %1236 = vmatpush1.msra.mxu0 0.0
    %1237 = vmatprep.subr.mxu0 0.0
    %1238 = vmatpush1.msra.mxu0 0.0
    %1239 = vmatprep.subr.mxu0 0.0
    %1240 = vmatpush1.msra.mxu0 0.0
    %1241 = vmatprep.subr.mxu0 0.0
    %1242 = vmatpush1.msra.mxu0 0.0
    %1243 = vmatprep.subr.mxu0 0.0
    %1244 = vmatpush1.msra.mxu0 0.0
    %1245 = vmatprep.subr.mxu0 0.0
    %1246 = vmatpush1.msra.mxu0 0.0
    %1247 = vmatprep.subr.mxu0 0.0
    %1248 = vmatpush1.msra.mxu0 0.0
    %1249 = vmatprep.mubr.f32.mxu0 0.0
    %1250 = vmatmul.mubr.f32.gmra.mrb[0].mxu0 %v1162
    %v1251 = vpop.f32.mrb[0].mxu0
    %v1252 = vadd.f32 %v1158, %v1251
    %v1253 = vpop.f32.mrb[0].mxu0
    %1254 = vmatprep.mubr.f32.mxu0 0.0
    %1255 = vmatmul.mubr.f32.gmra.mrb[0].mxu0 %v1165
    %v1256 = vpop.f32.mrb[0].mxu0
    %v1257 = vadd.f32 %v1158, %v1256
    %v1258 = vpop.f32.mrb[0].mxu0
    %1259 = vmatprep.mubr.f32.mxu0 0.0
    %1260 = vmatmul.mubr.f32.gmra.mrb[0].mxu0 %v1168
    %v1261 = vpop.f32.mrb[0].mxu0
    %v1262 = vadd.f32 %v1158, %v1261
    %v1263 = vpop.f32.mrb[0].mxu0
    %1264 = vmatprep.mubr.f32.mxu0 0.0
    %1265 = vmatmul.mubr.f32.gmra.mrb[0].mxu0 %v1171
    %v1266 = vpop.f32.mrb[0].mxu0
    %v1267 = vadd.f32 %v1158, %v1266
    %v1268 = vpop.f32.mrb[0].mxu0
    %1269 = vmatprep.mubr.f32.mxu0 0.0
    %1270 = vmatmul.mubr.f32.gmra.mrb[0].mxu0 %v1174
    %v1271 = vpop.f32.mrb[0].mxu0
    %v1272 = vadd.f32 %v1158, %v1271
    %v1273 = vpop.f32.mrb[0].mxu0
    %1274 = vmatprep.mubr.f32.mxu0 0.0
    %1275 = vmatmul.mubr.f32.gmra.mrb[0].mxu0 %v1177
    %v1276 = vpop.f32.mrb[0].mxu0
    %v1277 = vadd.f32 %v1158, %v1276
    %v1278 = vpop.f32.mrb[0].mxu0
    %1279 = vmatprep.mubr.f32.mxu0 0.0
    %1280 = vmatmul.mubr.f32.gmra.mrb[0].mxu0 %v1180
    %v1281 = vpop.f32.mrb[0].mxu0
    %v1282 = vadd.f32 %v1158, %v1281
    %v1283 = vpop.f32.mrb[0].mxu0
    %1284 = vmatprep.mubr.f32.mxu0 0.0
    %1285 = vmatmul.mubr.f32.gmra.mrb[0].mxu0 %v1183
    %v1286 = vpop.f32.mrb[0].mxu0
    %v1287 = vadd.f32 %v1158, %v1286
    %v1288 = vpop.f32.mrb[0].mxu0
    %1289 = vdwg.mxu0
    %vm1290 = vcmask 80896
    %1291 = vst.msk [vmem:[%s9] sm:$0xff] %vm1290, %v1252
    %1292 = vst.msk [vmem:[%s9 + $0x8] sm:$0xff] %vm1290, %v1257
    %1293 = vst.msk [vmem:[%s9 + $0x10] sm:$0xff] %vm1290, %v1262
    %1294 = vst.msk [vmem:[%s9 + $0x18] sm:$0xff] %vm1290, %v1267
    %1295 = vst.msk [vmem:[%s9 + $0x20] sm:$0xff] %vm1290, %v1272
    %1296 = vst.msk [vmem:[%s9 + $0x28] sm:$0xff] %vm1290, %v1277
    %1297 = vst.msk [vmem:[%s9 + $0x30] sm:$0xff] %vm1290, %v1282
    %1298 = vst.msk [vmem:[%s9 + $0x38] sm:$0xff] %vm1290, %v1287
    // Predicated region
    $region42: #{tpu_custom_call.1} parent=1 // pred_check
      _
    $region43: #{tpu_custom_call.1} parent=1 // pred_check_branch
      %1300 = sbr.rel (0) target = $region45
    $region44: #{tpu_custom_call.1} parent=1 // pred_region
      %s1302 = ssub.s32 2048, 2048
      %1303 = vsyncadd [#allocation4], %s1302
      %s1304 = sshll.u32 [#allocation7], 4
      %s1305 = int_to_ptr.vmem [resolvable:$true] %s1304
      %1310 = dma.vmem_to_hbm [thread:$0]  %s1305, 2048, %s8, [#allocation4], 256, 256, 16
    $region45: #{tpu_custom_call.1} parent=1 // pred_fallthru
      _
    // Predicated region
    $region46: #{tpu_custom_call.1} parent=1 // pred_check
      _
    $region47: #{tpu_custom_call.1} parent=1 // pred_check_branch
      %1312 = sbr.rel (0) target = $region49
    $region48: #{tpu_custom_call.1} parent=1 // pred_region
      _
    $region49: #{tpu_custom_call.1} parent=1 // pred_fallthru
      _
    // Predicated region
    $region50: #{tpu_custom_call.1} parent=1 // pred_check
      _
    $region51: #{tpu_custom_call.1} parent=1 // pred_check_branch
      %1314 = sbr.rel (0) target = $region53
    $region52: #{tpu_custom_call.1} parent=1 // pred_region
      %1315 = dma.done [#allocation4], 2048
    $region53: #{tpu_custom_call.1} parent=1 // pred_fallthru
      _
    // Predicated region
    $region54: #{tpu_custom_call.1} parent=1 // pred_check
      _
    $region55: #{tpu_custom_call.1} parent=1 // pred_check_branch
      %1317 = sbr.rel (0) target = $region57
    $region56: #{tpu_custom_call.1} parent=1 // pred_region
      _
    $region57: #{tpu_custom_call.1} parent=1 // pred_fallthru
      _
    %1318 = vsyncpa [#allocation3], 1
    %1319 = vsyncpa [#allocation6], 1
    %1320 = vsyncpa [#allocation4], 1

</llo_original>
